<compile_context>
chip_gen: v5e
topology: v5e:2x2
jax: 0.10.0
libtpu: 0.0.40
codegen_flags: <defaults>
</compile_context>

<pallas_src>
import numpy as np
import jax
import jax.numpy as jnp
from jax import lax
from jax.experimental import pallas as pl
from jax.experimental.pallas import tpu as pltpu


# ------------------------------ fused kernel -------------------------------- #

def make_fused_rnn_kernel(T, B, H, n_layers):
    """Builds the fused GRU-stack + head kernel for static (T, B, H, n_layers).

    Kernel ref layout (PrefetchScalarGridSpec ordering):
      lens_smem                      (B,)  int32   scalar-prefetch (SMEM)
      x_ref                          (T*B, D)      time-major, flattened rows
      lens_ref                       (B, 1) int32  for the per-row mask
      per layer l:  wih (D_l, 3H), whh (H, 3H), bi (1, 3H), bhn (1, H)
      w_out (H, O), b_out (1, O)
      o_ref (B, O)                   output
      h_scratch (T*B, H)             VMEM inter-layer activations
    """

    def kernel(lens_smem, *refs):
        x_ref, lens_ref = refs[0], refs[1]
        off = 2
        layer_refs = [refs[off + 4 * l: off + 4 * l + 4] for l in range(n_layers)]
        off += 4 * n_layers
        wout_ref, bout_ref = refs[off], refs[off + 1]
        o_ref = refs[off + 2]
        h_scratch = refs[off + 3]

        # max sequence length on the scalar unit (pad_packed pads to this).
        t_max = lens_smem[0]
        for b in range(1, B):
            t_max = jnp.maximum(t_max, lens_smem[b])

        h_cap = jnp.zeros((B, H), jnp.float32)   # last-layer state at t_max-1

        for l, (wih_ref, whh_ref, bi_ref, bhn_ref) in enumerate(layer_refs):
            last_layer = (l == n_layers - 1)

            # Hoisted input projection for the whole sequence: one big matmul
            # (T*B, D_l) x (D_l, 3H); r/z/n biases (b_ih + b_hh for r,z; b_in
            # for n) are folded in here.
            src = x_ref[...] if l == 0 else h_scratch[...]
            xp = (jnp.dot(src, wih_ref[...], preferred_element_type=jnp.float32)
                  + bi_ref[...])                                   # (T*B, 3H)

            whh = whh_ref[...]                                     # (H, 3H)
            bhn_b = jnp.broadcast_to(bhn_ref[...], (B, H))         # hoisted

            h = jnp.zeros((B, H), jnp.float32)
            for t in range(T):                                     # unrolled
                xp_t = xp[t * B:(t + 1) * B, :]                    # (B, 3H)
                hh = jnp.dot(h, whh, preferred_element_type=jnp.float32)
                rz = jax.nn.sigmoid(xp_t[:, :2 * H] + hh[:, :2 * H])
                r = rz[:, :H]
                z = rz[:, H:]
                n = jnp.tanh(xp_t[:, 2 * H:] + r * (hh[:, 2 * H:] + bhn_b))
                h = (1.0 - z) * n + z * h

                if last_layer:
                    # capture h at timestep t_max-1 (no per-step stores).
                    sel = (t_max == t + 1).astype(jnp.float32)
                    h_cap = sel * h + (1.0 - sel) * h_cap
                else:
                    h_scratch[t * B:(t + 1) * B, :] = h

        # Head: rows shorter than max(len) are padding zeros in the padded
        # GRU output, then the final Linear.
        row_mask = (lens_ref[...] == t_max).astype(jnp.float32)    # (B, 1)
        h_last = h_cap * row_mask
        o_ref[...] = (jnp.dot(h_last, wout_ref[...],
                              preferred_element_type=jnp.float32)
                      + bout_ref[...])

    return kernel


# ------------------------------- JAX wrapper -------------------------------- #

def rnn_forward(x, seq_len, params):
    """x: (B, T, E) float32, seq_len: (B, 1) int -> (B, n_out) float32."""
    B, T, E = x.shape
    H = params["gru"][0]["whh"].shape[0]
    O = params["w_out"].shape[1]
    L = len(params["gru"])

    # layout plumbing (outside the kernel): batch-first -> time-major, flatten
    # (T, B) rows so the per-layer input projection is a single matmul.
    x2d = jnp.transpose(x, (1, 0, 2)).reshape(T * B, E).astype(jnp.float32)
    lens = seq_len.reshape(B).astype(jnp.int32)
    lens_col = lens.reshape(B, 1)

    full2 = lambda shape: pl.BlockSpec(shape, lambda i, s: (0, 0))

    in_specs = [full2((T * B, E)), full2((B, 1))]
    args = [x2d, lens_col]
    for p in params["gru"]:
        d_in = p["wih"].shape[0]
        args += [p["wih"], p["whh"], p["bi"], p["bhn"]]
        in_specs += [full2((d_in, 3 * H)), full2((H, 3 * H)),
                     full2((1, 3 * H)), full2((1, H))]
    args += [params["w_out"], params["b_out"]]
    in_specs += [full2((H, O)), full2((1, O))]

    kernel = make_fused_rnn_kernel(T, B, H, L)

    return pl.pallas_call(
        kernel,
        out_shape=jax.ShapeDtypeStruct((B, O), jnp.float32),
        grid_spec=pltpu.PrefetchScalarGridSpec(
            num_scalar_prefetch=1,
            grid=(1,),
            in_specs=in_specs,
            out_specs=pl.BlockSpec((B, O), lambda i, s: (0, 0)),
            scratch_shapes=[pltpu.VMEM((T * B, H), jnp.float32)],
        ),
        compiler_params=pltpu.CompilerParams(
            dimension_semantics=("arbitrary",)),
    )(lens, *args)


# ----------------------- pure-JAX reference (for check) --------------------- #

def gru_layer_ref(x_tm, p):
    H = p["whh"].shape[0]
    B = x_tm.shape[1]

    def step(h, x_t):
        xp = x_t @ p["wih"] + p["bi"]
        hh = h @ p["whh"]
        r = jax.nn.sigmoid(xp[:, :H] + hh[:, :H])
        z = jax.nn.sigmoid(xp[:, H:2 * H] + hh[:, H:2 * H])
        n = jnp.tanh(xp[:, 2 * H:] + r * (hh[:, 2 * H:] + p["bhn"]))
        h_new = (1.0 - z) * n + z * h
        return h_new, h_new

    _, ys = lax.scan(step, jnp.zeros((B, H), jnp.float32), x_tm)
    return ys


def rnn_forward_ref(x, seq_len, params):
    B, T, E = x.shape
    h = jnp.transpose(x, (1, 0, 2))                   # (T, B, E)
    for p in params["gru"]:
        h = gru_layer_ref(h, p)
    lens = seq_len.reshape(B, 1).astype(jnp.int32)
    t_max = jnp.max(lens)
    h_last = h[t_max - 1]
    h_last = jnp.where(lens == t_max, h_last, 0.0)
    return h_last @ params["w_out"] + params["b_out"]


# --------------------------------- parameters -------------------------------- #

def init_params(key, embed_dim, hidden_dim, n_layers, n_out):
    """Deterministic init, PyTorch nn.GRU / nn.Linear shapes, gates fused (r,z,n)."""
    k = 1.0 / float(hidden_dim) ** 0.5
    params = {"gru": []}
    for l in range(n_layers):
        in_dim = embed_dim if l == 0 else hidden_dim
        key, k1, k2, k3, k4 = jax.random.split(key, 5)
        w_ih = jax.random.uniform(k1, (3 * hidden_dim, in_dim), jnp.float32, -k, k)
        w_hh = jax.random.uniform(k2, (3 * hidden_dim, hidden_dim), jnp.float32, -k, k)
        b_ih = jax.random.uniform(k3, (3 * hidden_dim,), jnp.float32, -k, k)
        b_hh = jax.random.uniform(k4, (3 * hidden_dim,), jnp.float32, -k, k)
        bir, biz, bin_ = jnp.split(b_ih, 3)
        bhr, bhz, bhn = jnp.split(b_hh, 3)
        params["gru"].append(dict(
            wih=w_ih.T,                                        # (in_dim, 3H), cols [r|z|n]
            whh=w_hh.T,                                        # (H, 3H),     cols [r|z|n]
            bi=jnp.concatenate([bir + bhr, biz + bhz, bin_]).reshape(1, -1),
            bhn=bhn.reshape(1, -1),                            # stays inside r*(...)
        ))
    key, kw, kb = jax.random.split(key, 3)
    params["w_out"] = jax.random.uniform(kw, (hidden_dim, n_out), jnp.float32, -k, k)
    params["b_out"] = jax.random.uniform(kb, (1, n_out), jnp.float32, -k, k)
    return params


# ------------------------------------ main ----------------------------------- #

if __name__ == "__main__":
    # args: pred_embed_dim=32, pred_hidden_dim=32, rnn_layer=2, task='diagnosis'
    B, T, E, H, L = 2, 8, 32, 32, 2
    N_OUT = 18

    key = jax.random.PRNGKey(0)
    kx, kp = jax.random.split(key)
    x = jax.random.normal(kx, (B, T, E), jnp.float32)
    seq_len = jnp.array([[T], [5]], dtype=jnp.int32)     # (B, 1) like PyTorch

    params = init_params(kp, E, H, L, N_OUT)

    out = rnn_forward(x, seq_len, params)
    out = jax.block_until_ready(out)
    assert out.shape == (B, N_OUT)

    ref = rnn_forward_ref(x, seq_len, params)
    np.testing.assert_allclose(np.asarray(out), np.asarray(ref),
                               rtol=2e-3, atol=2e-3)
    print("KERNEL_OK")
</pallas_src>

<mosaic_0001>
module attributes {stable_mosaic.version = 11 : i64} {
  func.func @kernel(%arg0: i32, %arg1: memref<2xi32, #tpu.memory_space<smem>>, %arg2: memref<16x32xf32, #tpu.memory_space<vmem>>, %arg3: memref<2x1xi32, #tpu.memory_space<vmem>>, %arg4: memref<32x96xf32, #tpu.memory_space<vmem>>, %arg5: memref<32x96xf32, #tpu.memory_space<vmem>>, %arg6: memref<1x96xf32, #tpu.memory_space<vmem>>, %arg7: memref<1x32xf32, #tpu.memory_space<vmem>>, %arg8: memref<32x96xf32, #tpu.memory_space<vmem>>, %arg9: memref<32x96xf32, #tpu.memory_space<vmem>>, %arg10: memref<1x96xf32, #tpu.memory_space<vmem>>, %arg11: memref<1x32xf32, #tpu.memory_space<vmem>>, %arg12: memref<32x18xf32, #tpu.memory_space<vmem>>, %arg13: memref<1x18xf32, #tpu.memory_space<vmem>>, %arg14: memref<2x18xf32, #tpu.memory_space<vmem>>, %arg15: memref<16x32xf32, #tpu.memory_space<vmem>>) attributes {dimension_semantics = [#tpu.dimension_semantics<arbitrary>], iteration_bounds = array<i64: 1>, scalar_prefetch = 1 : i64, scratch_operands = 1 : i64, tpu.core_type = #tpu.core_type<tc>, window_params = [{pipeline_mode = #tpu.pipeline_mode<synchronous>, transform_indices = @transform_0, window_bounds = array<i64: 16, 32>}, {pipeline_mode = #tpu.pipeline_mode<synchronous>, transform_indices = @transform_1, window_bounds = array<i64: 2, 1>}, {pipeline_mode = #tpu.pipeline_mode<synchronous>, transform_indices = @transform_2, window_bounds = array<i64: 32, 96>}, {pipeline_mode = #tpu.pipeline_mode<synchronous>, transform_indices = @transform_3, window_bounds = array<i64: 32, 96>}, {pipeline_mode = #tpu.pipeline_mode<synchronous>, transform_indices = @transform_4, window_bounds = array<i64: 1, 96>}, {pipeline_mode = #tpu.pipeline_mode<synchronous>, transform_indices = @transform_5, window_bounds = array<i64: 1, 32>}, {pipeline_mode = #tpu.pipeline_mode<synchronous>, transform_indices = @transform_6, window_bounds = array<i64: 32, 96>}, {pipeline_mode = #tpu.pipeline_mode<synchronous>, transform_indices = @transform_7, window_bounds = array<i64: 32, 96>}, {pipeline_mode = #tpu.pipeline_mode<synchronous>, transform_indices = @transform_8, window_bounds = array<i64: 1, 96>}, {pipeline_mode = #tpu.pipeline_mode<synchronous>, transform_indices = @transform_9, window_bounds = array<i64: 1, 32>}, {pipeline_mode = #tpu.pipeline_mode<synchronous>, transform_indices = @transform_10, window_bounds = array<i64: 32, 18>}, {pipeline_mode = #tpu.pipeline_mode<synchronous>, transform_indices = @transform_11, window_bounds = array<i64: 1, 18>}, {pipeline_mode = #tpu.pipeline_mode<synchronous>, transform_indices = @transform_12, window_bounds = array<i64: 2, 18>}]} {
    %c0 = arith.constant 0 : index
    %0 = memref.load %arg1[%c0] : memref<2xi32, #tpu.memory_space<smem>>
    %c1 = arith.constant 1 : index
    %1 = memref.load %arg1[%c1] : memref<2xi32, #tpu.memory_space<smem>>
    %2 = arith.maxsi %0, %1 : i32
    %cst = arith.constant 0.000000e+00 : f32
    %3 = vector.broadcast %cst : f32 to vector<2x32xf32>
    %c0_0 = arith.constant 0 : index
    %c0_1 = arith.constant 0 : index
    %4 = vector.load %arg2[%c0_0, %c0_1] : memref<16x32xf32, #tpu.memory_space<vmem>>, vector<16x32xf32>
    %c0_2 = arith.constant 0 : index
    %c0_3 = arith.constant 0 : index
    %5 = vector.load %arg4[%c0_2, %c0_3] : memref<32x96xf32, #tpu.memory_space<vmem>>, vector<32x96xf32>
    %cst_4 = arith.constant dense<0.000000e+00> : vector<16x96xf32>
    %6 = tpu.matmul %4, %5, %cst_4 {dimension_numbers = #tpu.dot_dimension_numbers<[1], [0], [0], [1], [0, 0, 1, 1], [], []>} : vector<16x32xf32>, vector<32x96xf32>, vector<16x96xf32> -> vector<16x96xf32>
    %c0_5 = arith.constant 0 : index
    %c0_6 = arith.constant 0 : index
    %7 = vector.load %arg6[%c0_5, %c0_6] : memref<1x96xf32, #tpu.memory_space<vmem>>, vector<1x96xf32>
    %8 = vector.broadcast %7 : vector<1x96xf32> to vector<16x96xf32>
    %9 = arith.addf %6, %8 : vector<16x96xf32>
    %c0_7 = arith.constant 0 : index
    %c0_8 = arith.constant 0 : index
    %10 = vector.load %arg5[%c0_7, %c0_8] : memref<32x96xf32, #tpu.memory_space<vmem>>, vector<32x96xf32>
    %c0_9 = arith.constant 0 : index
    %c0_10 = arith.constant 0 : index
    %11 = vector.load %arg7[%c0_9, %c0_10] : memref<1x32xf32, #tpu.memory_space<vmem>>, vector<1x32xf32>
    %12 = vector.shape_cast %11 : vector<1x32xf32> to vector<1x32xf32>
    %13 = vector.broadcast %12 : vector<1x32xf32> to vector<2x32xf32>
    %cst_11 = arith.constant 0.000000e+00 : f32
    %14 = vector.broadcast %cst_11 : f32 to vector<2x32xf32>
    %15 = vector.extract_strided_slice %9 {offsets = [0, 0], sizes = [2, 96], strides = [1, 1]} : vector<16x96xf32> to vector<2x96xf32>
    %cst_12 = arith.constant dense<0.000000e+00> : vector<2x96xf32>
    %16 = tpu.matmul %14, %10, %cst_12 {dimension_numbers = #tpu.dot_dimension_numbers<[1], [0], [0], [1], [0, 0, 1, 1], [], []>} : vector<2x32xf32>, vector<32x96xf32>, vector<2x96xf32> -> vector<2x96xf32>
    %17 = vector.extract_strided_slice %15 {offsets = [0, 0], sizes = [2, 64], strides = [1, 1]} : vector<2x96xf32> to vector<2x64xf32>
    %18 = vector.extract_strided_slice %16 {offsets = [0, 0], sizes = [2, 64], strides = [1, 1]} : vector<2x96xf32> to vector<2x64xf32>
    %19 = arith.addf %17, %18 : vector<2x64xf32>
    %20 = arith.negf %19 : vector<2x64xf32>
    %21 = math.exp %20 : vector<2x64xf32>
    %cst_13 = arith.constant 1.000000e+00 : f32
    %22 = vector.broadcast %cst_13 : f32 to vector<2x64xf32>
    %23 = arith.addf %22, %21 : vector<2x64xf32>
    %24 = arith.divf %22, %23 : vector<2x64xf32>
    %25 = vector.extract_strided_slice %24 {offsets = [0, 0], sizes = [2, 32], strides = [1, 1]} : vector<2x64xf32> to vector<2x32xf32>
    %26 = vector.extract_strided_slice %24 {offsets = [0, 32], sizes = [2, 32], strides = [1, 1]} : vector<2x64xf32> to vector<2x32xf32>
    %27 = vector.extract_strided_slice %15 {offsets = [0, 64], sizes = [2, 32], strides = [1, 1]} : vector<2x96xf32> to vector<2x32xf32>
    %28 = vector.extract_strided_slice %16 {offsets = [0, 64], sizes = [2, 32], strides = [1, 1]} : vector<2x96xf32> to vector<2x32xf32>
    %29 = arith.addf %28, %13 : vector<2x32xf32>
    %30 = arith.mulf %25, %29 : vector<2x32xf32>
    %31 = arith.addf %27, %30 : vector<2x32xf32>
    %32 = math.tanh %31 : vector<2x32xf32>
    %cst_14 = arith.constant 1.000000e+00 : f32
    %33 = vector.broadcast %cst_14 : f32 to vector<2x32xf32>
    %34 = arith.subf %33, %26 : vector<2x32xf32>
    %35 = arith.mulf %34, %32 : vector<2x32xf32>
    %36 = arith.mulf %26, %14 : vector<2x32xf32>
    %37 = arith.addf %35, %36 : vector<2x32xf32>
    %c0_15 = arith.constant 0 : index
    %c0_16 = arith.constant 0 : index
    %38 = vector.load %arg15[%c0_15, %c0_16] : memref<16x32xf32, #tpu.memory_space<vmem>>, vector<2x32xf32>
    tpu.vector_store %arg15[%c0_15, %c0_16], %37 {strides = array<i32>} : memref<16x32xf32, #tpu.memory_space<vmem>>, vector<2x32xf32>,
    %39 = vector.extract_strided_slice %9 {offsets = [2, 0], sizes = [2, 96], strides = [1, 1]} : vector<16x96xf32> to vector<2x96xf32>
    %cst_17 = arith.constant dense<0.000000e+00> : vector<2x96xf32>
    %40 = tpu.matmul %37, %10, %cst_17 {dimension_numbers = #tpu.dot_dimension_numbers<[1], [0], [0], [1], [0, 0, 1, 1], [], []>} : vector<2x32xf32>, vector<32x96xf32>, vector<2x96xf32> -> vector<2x96xf32>
    %41 = vector.extract_strided_slice %39 {offsets = [0, 0], sizes = [2, 64], strides = [1, 1]} : vector<2x96xf32> to vector<2x64xf32>
    %42 = vector.extract_strided_slice %40 {offsets = [0, 0], sizes = [2, 64], strides = [1, 1]} : vector<2x96xf32> to vector<2x64xf32>
    %43 = arith.addf %41, %42 : vector<2x64xf32>
    %44 = arith.negf %43 : vector<2x64xf32>
    %45 = math.exp %44 : vector<2x64xf32>
    %cst_18 = arith.constant 1.000000e+00 : f32
    %46 = vector.broadcast %cst_18 : f32 to vector<2x64xf32>
    %47 = arith.addf %46, %45 : vector<2x64xf32>
    %48 = arith.divf %46, %47 : vector<2x64xf32>
    %49 = vector.extract_strided_slice %48 {offsets = [0, 0], sizes = [2, 32], strides = [1, 1]} : vector<2x64xf32> to vector<2x32xf32>
    %50 = vector.extract_strided_slice %48 {offsets = [0, 32], sizes = [2, 32], strides = [1, 1]} : vector<2x64xf32> to vector<2x32xf32>
    %51 = vector.extract_strided_slice %39 {offsets = [0, 64], sizes = [2, 32], strides = [1, 1]} : vector<2x96xf32> to vector<2x32xf32>
    %52 = vector.extract_strided_slice %40 {offsets = [0, 64], sizes = [2, 32], strides = [1, 1]} : vector<2x96xf32> to vector<2x32xf32>
    %53 = arith.addf %52, %13 : vector<2x32xf32>
    %54 = arith.mulf %49, %53 : vector<2x32xf32>
    %55 = arith.addf %51, %54 : vector<2x32xf32>
    %56 = math.tanh %55 : vector<2x32xf32>
    %cst_19 = arith.constant 1.000000e+00 : f32
    %57 = vector.broadcast %cst_19 : f32 to vector<2x32xf32>
    %58 = arith.subf %57, %50 : vector<2x32xf32>
    %59 = arith.mulf %58, %56 : vector<2x32xf32>
    %60 = arith.mulf %50, %37 : vector<2x32xf32>
    %61 = arith.addf %59, %60 : vector<2x32xf32>
    %c2 = arith.constant 2 : index
    %c0_20 = arith.constant 0 : index
    %62 = vector.load %arg15[%c2, %c0_20] : memref<16x32xf32, #tpu.memory_space<vmem>>, vector<2x32xf32>
    tpu.vector_store %arg15[%c2, %c0_20], %61 {strides = array<i32>} : memref<16x32xf32, #tpu.memory_space<vmem>>, vector<2x32xf32>,
    %63 = vector.extract_strided_slice %9 {offsets = [4, 0], sizes = [2, 96], strides = [1, 1]} : vector<16x96xf32> to vector<2x96xf32>
    %cst_21 = arith.constant dense<0.000000e+00> : vector<2x96xf32>
    %64 = tpu.matmul %61, %10, %cst_21 {dimension_numbers = #tpu.dot_dimension_numbers<[1], [0], [0], [1], [0, 0, 1, 1], [], []>} : vector<2x32xf32>, vector<32x96xf32>, vector<2x96xf32> -> vector<2x96xf32>
    %65 = vector.extract_strided_slice %63 {offsets = [0, 0], sizes = [2, 64], strides = [1, 1]} : vector<2x96xf32> to vector<2x64xf32>
    %66 = vector.extract_strided_slice %64 {offsets = [0, 0], sizes = [2, 64], strides = [1, 1]} : vector<2x96xf32> to vector<2x64xf32>
    %67 = arith.addf %65, %66 : vector<2x64xf32>
    %68 = arith.negf %67 : vector<2x64xf32>
    %69 = math.exp %68 : vector<2x64xf32>
    %cst_22 = arith.constant 1.000000e+00 : f32
    %70 = vector.broadcast %cst_22 : f32 to vector<2x64xf32>
    %71 = arith.addf %70, %69 : vector<2x64xf32>
    %72 = arith.divf %70, %71 : vector<2x64xf32>
    %73 = vector.extract_strided_slice %72 {offsets = [0, 0], sizes = [2, 32], strides = [1, 1]} : vector<2x64xf32> to vector<2x32xf32>
    %74 = vector.extract_strided_slice %72 {offsets = [0, 32], sizes = [2, 32], strides = [1, 1]} : vector<2x64xf32> to vector<2x32xf32>
    %75 = vector.extract_strided_slice %63 {offsets = [0, 64], sizes = [2, 32], strides = [1, 1]} : vector<2x96xf32> to vector<2x32xf32>
    %76 = vector.extract_strided_slice %64 {offsets = [0, 64], sizes = [2, 32], strides = [1, 1]} : vector<2x96xf32> to vector<2x32xf32>
    %77 = arith.addf %76, %13 : vector<2x32xf32>
    %78 = arith.mulf %73, %77 : vector<2x32xf32>
    %79 = arith.addf %75, %78 : vector<2x32xf32>
    %80 = math.tanh %79 : vector<2x32xf32>
    %cst_23 = arith.constant 1.000000e+00 : f32
    %81 = vector.broadcast %cst_23 : f32 to vector<2x32xf32>
    %82 = arith.subf %81, %74 : vector<2x32xf32>
    %83 = arith.mulf %82, %80 : vector<2x32xf32>
    %84 = arith.mulf %74, %61 : vector<2x32xf32>
    %85 = arith.addf %83, %84 : vector<2x32xf32>
    %c4 = arith.constant 4 : index
    %c0_24 = arith.constant 0 : index
    %86 = vector.load %arg15[%c4, %c0_24] : memref<16x32xf32, #tpu.memory_space<vmem>>, vector<2x32xf32>
    tpu.vector_store %arg15[%c4, %c0_24], %85 {strides = array<i32>} : memref<16x32xf32, #tpu.memory_space<vmem>>, vector<2x32xf32>,
    %87 = vector.extract_strided_slice %9 {offsets = [6, 0], sizes = [2, 96], strides = [1, 1]} : vector<16x96xf32> to vector<2x96xf32>
    %cst_25 = arith.constant dense<0.000000e+00> : vector<2x96xf32>
    %88 = tpu.matmul %85, %10, %cst_25 {dimension_numbers = #tpu.dot_dimension_numbers<[1], [0], [0], [1], [0, 0, 1, 1], [], []>} : vector<2x32xf32>, vector<32x96xf32>, vector<2x96xf32> -> vector<2x96xf32>
    %89 = vector.extract_strided_slice %87 {offsets = [0, 0], sizes = [2, 64], strides = [1, 1]} : vector<2x96xf32> to vector<2x64xf32>
    %90 = vector.extract_strided_slice %88 {offsets = [0, 0], sizes = [2, 64], strides = [1, 1]} : vector<2x96xf32> to vector<2x64xf32>
    %91 = arith.addf %89, %90 : vector<2x64xf32>
    %92 = arith.negf %91 : vector<2x64xf32>
    %93 = math.exp %92 : vector<2x64xf32>
    %cst_26 = arith.constant 1.000000e+00 : f32
    %94 = vector.broadcast %cst_26 : f32 to vector<2x64xf32>
    %95 = arith.addf %94, %93 : vector<2x64xf32>
    %96 = arith.divf %94, %95 : vector<2x64xf32>
    %97 = vector.extract_strided_slice %96 {offsets = [0, 0], sizes = [2, 32], strides = [1, 1]} : vector<2x64xf32> to vector<2x32xf32>
    %98 = vector.extract_strided_slice %96 {offsets = [0, 32], sizes = [2, 32], strides = [1, 1]} : vector<2x64xf32> to vector<2x32xf32>
    %99 = vector.extract_strided_slice %87 {offsets = [0, 64], sizes = [2, 32], strides = [1, 1]} : vector<2x96xf32> to vector<2x32xf32>
    %100 = vector.extract_strided_slice %88 {offsets = [0, 64], sizes = [2, 32], strides = [1, 1]} : vector<2x96xf32> to vector<2x32xf32>
    %101 = arith.addf %100, %13 : vector<2x32xf32>
    %102 = arith.mulf %97, %101 : vector<2x32xf32>
    %103 = arith.addf %99, %102 : vector<2x32xf32>
    %104 = math.tanh %103 : vector<2x32xf32>
    %cst_27 = arith.constant 1.000000e+00 : f32
    %105 = vector.broadcast %cst_27 : f32 to vector<2x32xf32>
    %106 = arith.subf %105, %98 : vector<2x32xf32>
    %107 = arith.mulf %106, %104 : vector<2x32xf32>
    %108 = arith.mulf %98, %85 : vector<2x32xf32>
    %109 = arith.addf %107, %108 : vector<2x32xf32>
    %c6 = arith.constant 6 : index
    %c0_28 = arith.constant 0 : index
    %110 = vector.load %arg15[%c6, %c0_28] : memref<16x32xf32, #tpu.memory_space<vmem>>, vector<2x32xf32>
    tpu.vector_store %arg15[%c6, %c0_28], %109 {strides = array<i32>} : memref<16x32xf32, #tpu.memory_space<vmem>>, vector<2x32xf32>,
    %111 = vector.extract_strided_slice %9 {offsets = [8, 0], sizes = [2, 96], strides = [1, 1]} : vector<16x96xf32> to vector<2x96xf32>
    %cst_29 = arith.constant dense<0.000000e+00> : vector<2x96xf32>
    %112 = tpu.matmul %109, %10, %cst_29 {dimension_numbers = #tpu.dot_dimension_numbers<[1], [0], [0], [1], [0, 0, 1, 1], [], []>} : vector<2x32xf32>, vector<32x96xf32>, vector<2x96xf32> -> vector<2x96xf32>
    %113 = vector.extract_strided_slice %111 {offsets = [0, 0], sizes = [2, 64], strides = [1, 1]} : vector<2x96xf32> to vector<2x64xf32>
    %114 = vector.extract_strided_slice %112 {offsets = [0, 0], sizes = [2, 64], strides = [1, 1]} : vector<2x96xf32> to vector<2x64xf32>
    %115 = arith.addf %113, %114 : vector<2x64xf32>
    %116 = arith.negf %115 : vector<2x64xf32>
    %117 = math.exp %116 : vector<2x64xf32>
    %cst_30 = arith.constant 1.000000e+00 : f32
    %118 = vector.broadcast %cst_30 : f32 to vector<2x64xf32>
    %119 = arith.addf %118, %117 : vector<2x64xf32>
    %120 = arith.divf %118, %119 : vector<2x64xf32>
    %121 = vector.extract_strided_slice %120 {offsets = [0, 0], sizes = [2, 32], strides = [1, 1]} : vector<2x64xf32> to vector<2x32xf32>
    %122 = vector.extract_strided_slice %120 {offsets = [0, 32], sizes = [2, 32], strides = [1, 1]} : vector<2x64xf32> to vector<2x32xf32>
    %123 = vector.extract_strided_slice %111 {offsets = [0, 64], sizes = [2, 32], strides = [1, 1]} : vector<2x96xf32> to vector<2x32xf32>
    %124 = vector.extract_strided_slice %112 {offsets = [0, 64], sizes = [2, 32], strides = [1, 1]} : vector<2x96xf32> to vector<2x32xf32>
    %125 = arith.addf %124, %13 : vector<2x32xf32>
    %126 = arith.mulf %121, %125 : vector<2x32xf32>
    %127 = arith.addf %123, %126 : vector<2x32xf32>
    %128 = math.tanh %127 : vector<2x32xf32>
    %cst_31 = arith.constant 1.000000e+00 : f32
    %129 = vector.broadcast %cst_31 : f32 to vector<2x32xf32>
    %130 = arith.subf %129, %122 : vector<2x32xf32>
    %131 = arith.mulf %130, %128 : vector<2x32xf32>
    %132 = arith.mulf %122, %109 : vector<2x32xf32>
    %133 = arith.addf %131, %132 : vector<2x32xf32>
    %c8 = arith.constant 8 : index
    %c0_32 = arith.constant 0 : index
    %134 = vector.load %arg15[%c8, %c0_32] : memref<16x32xf32, #tpu.memory_space<vmem>>, vector<2x32xf32>
    tpu.vector_store %arg15[%c8, %c0_32], %133 {strides = array<i32>} : memref<16x32xf32, #tpu.memory_space<vmem>>, vector<2x32xf32>,
    %135 = vector.extract_strided_slice %9 {offsets = [10, 0], sizes = [2, 96], strides = [1, 1]} : vector<16x96xf32> to vector<2x96xf32>
    %cst_33 = arith.constant dense<0.000000e+00> : vector<2x96xf32>
    %136 = tpu.matmul %133, %10, %cst_33 {dimension_numbers = #tpu.dot_dimension_numbers<[1], [0], [0], [1], [0, 0, 1, 1], [], []>} : vector<2x32xf32>, vector<32x96xf32>, vector<2x96xf32> -> vector<2x96xf32>
    %137 = vector.extract_strided_slice %135 {offsets = [0, 0], sizes = [2, 64], strides = [1, 1]} : vector<2x96xf32> to vector<2x64xf32>
    %138 = vector.extract_strided_slice %136 {offsets = [0, 0], sizes = [2, 64], strides = [1, 1]} : vector<2x96xf32> to vector<2x64xf32>
    %139 = arith.addf %137, %138 : vector<2x64xf32>
    %140 = arith.negf %139 : vector<2x64xf32>
    %141 = math.exp %140 : vector<2x64xf32>
    %cst_34 = arith.constant 1.000000e+00 : f32
    %142 = vector.broadcast %cst_34 : f32 to vector<2x64xf32>
    %143 = arith.addf %142, %141 : vector<2x64xf32>
    %144 = arith.divf %142, %143 : vector<2x64xf32>
    %145 = vector.extract_strided_slice %144 {offsets = [0, 0], sizes = [2, 32], strides = [1, 1]} : vector<2x64xf32> to vector<2x32xf32>
    %146 = vector.extract_strided_slice %144 {offsets = [0, 32], sizes = [2, 32], strides = [1, 1]} : vector<2x64xf32> to vector<2x32xf32>
    %147 = vector.extract_strided_slice %135 {offsets = [0, 64], sizes = [2, 32], strides = [1, 1]} : vector<2x96xf32> to vector<2x32xf32>
    %148 = vector.extract_strided_slice %136 {offsets = [0, 64], sizes = [2, 32], strides = [1, 1]} : vector<2x96xf32> to vector<2x32xf32>
    %149 = arith.addf %148, %13 : vector<2x32xf32>
    %150 = arith.mulf %145, %149 : vector<2x32xf32>
    %151 = arith.addf %147, %150 : vector<2x32xf32>
    %152 = math.tanh %151 : vector<2x32xf32>
    %cst_35 = arith.constant 1.000000e+00 : f32
    %153 = vector.broadcast %cst_35 : f32 to vector<2x32xf32>
    %154 = arith.subf %153, %146 : vector<2x32xf32>
    %155 = arith.mulf %154, %152 : vector<2x32xf32>
    %156 = arith.mulf %146, %133 : vector<2x32xf32>
    %157 = arith.addf %155, %156 : vector<2x32xf32>
    %c10 = arith.constant 10 : index
    %c0_36 = arith.constant 0 : index
    %158 = vector.load %arg15[%c10, %c0_36] : memref<16x32xf32, #tpu.memory_space<vmem>>, vector<2x32xf32>
    tpu.vector_store %arg15[%c10, %c0_36], %157 {strides = array<i32>} : memref<16x32xf32, #tpu.memory_space<vmem>>, vector<2x32xf32>,
    %159 = vector.extract_strided_slice %9 {offsets = [12, 0], sizes = [2, 96], strides = [1, 1]} : vector<16x96xf32> to vector<2x96xf32>
    %cst_37 = arith.constant dense<0.000000e+00> : vector<2x96xf32>
    %160 = tpu.matmul %157, %10, %cst_37 {dimension_numbers = #tpu.dot_dimension_numbers<[1], [0], [0], [1], [0, 0, 1, 1], [], []>} : vector<2x32xf32>, vector<32x96xf32>, vector<2x96xf32> -> vector<2x96xf32>
    %161 = vector.extract_strided_slice %159 {offsets = [0, 0], sizes = [2, 64], strides = [1, 1]} : vector<2x96xf32> to vector<2x64xf32>
    %162 = vector.extract_strided_slice %160 {offsets = [0, 0], sizes = [2, 64], strides = [1, 1]} : vector<2x96xf32> to vector<2x64xf32>
    %163 = arith.addf %161, %162 : vector<2x64xf32>
    %164 = arith.negf %163 : vector<2x64xf32>
    %165 = math.exp %164 : vector<2x64xf32>
    %cst_38 = arith.constant 1.000000e+00 : f32
    %166 = vector.broadcast %cst_38 : f32 to vector<2x64xf32>
    %167 = arith.addf %166, %165 : vector<2x64xf32>
    %168 = arith.divf %166, %167 : vector<2x64xf32>
    %169 = vector.extract_strided_slice %168 {offsets = [0, 0], sizes = [2, 32], strides = [1, 1]} : vector<2x64xf32> to vector<2x32xf32>
    %170 = vector.extract_strided_slice %168 {offsets = [0, 32], sizes = [2, 32], strides = [1, 1]} : vector<2x64xf32> to vector<2x32xf32>
    %171 = vector.extract_strided_slice %159 {offsets = [0, 64], sizes = [2, 32], strides = [1, 1]} : vector<2x96xf32> to vector<2x32xf32>
    %172 = vector.extract_strided_slice %160 {offsets = [0, 64], sizes = [2, 32], strides = [1, 1]} : vector<2x96xf32> to vector<2x32xf32>
    %173 = arith.addf %172, %13 : vector<2x32xf32>
    %174 = arith.mulf %169, %173 : vector<2x32xf32>
    %175 = arith.addf %171, %174 : vector<2x32xf32>
    %176 = math.tanh %175 : vector<2x32xf32>
    %cst_39 = arith.constant 1.000000e+00 : f32
    %177 = vector.broadcast %cst_39 : f32 to vector<2x32xf32>
    %178 = arith.subf %177, %170 : vector<2x32xf32>
    %179 = arith.mulf %178, %176 : vector<2x32xf32>
    %180 = arith.mulf %170, %157 : vector<2x32xf32>
    %181 = arith.addf %179, %180 : vector<2x32xf32>
    %c12 = arith.constant 12 : index
    %c0_40 = arith.constant 0 : index
    %182 = vector.load %arg15[%c12, %c0_40] : memref<16x32xf32, #tpu.memory_space<vmem>>, vector<2x32xf32>
    tpu.vector_store %arg15[%c12, %c0_40], %181 {strides = array<i32>} : memref<16x32xf32, #tpu.memory_space<vmem>>, vector<2x32xf32>,
    %183 = vector.extract_strided_slice %9 {offsets = [14, 0], sizes = [2, 96], strides = [1, 1]} : vector<16x96xf32> to vector<2x96xf32>
    %cst_41 = arith.constant dense<0.000000e+00> : vector<2x96xf32>
    %184 = tpu.matmul %181, %10, %cst_41 {dimension_numbers = #tpu.dot_dimension_numbers<[1], [0], [0], [1], [0, 0, 1, 1], [], []>} : vector<2x32xf32>, vector<32x96xf32>, vector<2x96xf32> -> vector<2x96xf32>
    %185 = vector.extract_strided_slice %183 {offsets = [0, 0], sizes = [2, 64], strides = [1, 1]} : vector<2x96xf32> to vector<2x64xf32>
    %186 = vector.extract_strided_slice %184 {offsets = [0, 0], sizes = [2, 64], strides = [1, 1]} : vector<2x96xf32> to vector<2x64xf32>
    %187 = arith.addf %185, %186 : vector<2x64xf32>
    %188 = arith.negf %187 : vector<2x64xf32>
    %189 = math.exp %188 : vector<2x64xf32>
    %cst_42 = arith.constant 1.000000e+00 : f32
    %190 = vector.broadcast %cst_42 : f32 to vector<2x64xf32>
    %191 = arith.addf %190, %189 : vector<2x64xf32>
    %192 = arith.divf %190, %191 : vector<2x64xf32>
    %193 = vector.extract_strided_slice %192 {offsets = [0, 0], sizes = [2, 32], strides = [1, 1]} : vector<2x64xf32> to vector<2x32xf32>
    %194 = vector.extract_strided_slice %192 {offsets = [0, 32], sizes = [2, 32], strides = [1, 1]} : vector<2x64xf32> to vector<2x32xf32>
    %195 = vector.extract_strided_slice %183 {offsets = [0, 64], sizes = [2, 32], strides = [1, 1]} : vector<2x96xf32> to vector<2x32xf32>
    %196 = vector.extract_strided_slice %184 {offsets = [0, 64], sizes = [2, 32], strides = [1, 1]} : vector<2x96xf32> to vector<2x32xf32>
    %197 = arith.addf %196, %13 : vector<2x32xf32>
    %198 = arith.mulf %193, %197 : vector<2x32xf32>
    %199 = arith.addf %195, %198 : vector<2x32xf32>
    %200 = math.tanh %199 : vector<2x32xf32>
    %cst_43 = arith.constant 1.000000e+00 : f32
    %201 = vector.broadcast %cst_43 : f32 to vector<2x32xf32>
    %202 = arith.subf %201, %194 : vector<2x32xf32>
    %203 = arith.mulf %202, %200 : vector<2x32xf32>
    %204 = arith.mulf %194, %181 : vector<2x32xf32>
    %205 = arith.addf %203, %204 : vector<2x32xf32>
    %c14 = arith.constant 14 : index
    %c0_44 = arith.constant 0 : index
    %206 = vector.load %arg15[%c14, %c0_44] : memref<16x32xf32, #tpu.memory_space<vmem>>, vector<2x32xf32>
    tpu.vector_store %arg15[%c14, %c0_44], %205 {strides = array<i32>} : memref<16x32xf32, #tpu.memory_space<vmem>>, vector<2x32xf32>,
    %c0_45 = arith.constant 0 : index
    %c0_46 = arith.constant 0 : index
    %207 = vector.load %arg15[%c0_45, %c0_46] : memref<16x32xf32, #tpu.memory_space<vmem>>, vector<16x32xf32>
    %c0_47 = arith.constant 0 : index
    %c0_48 = arith.constant 0 : index
    %208 = vector.load %arg8[%c0_47, %c0_48] : memref<32x96xf32, #tpu.memory_space<vmem>>, vector<32x96xf32>
    %cst_49 = arith.constant dense<0.000000e+00> : vector<16x96xf32>
    %209 = tpu.matmul %207, %208, %cst_49 {dimension_numbers = #tpu.dot_dimension_numbers<[1], [0], [0], [1], [0, 0, 1, 1], [], []>} : vector<16x32xf32>, vector<32x96xf32>, vector<16x96xf32> -> vector<16x96xf32>
    %c0_50 = arith.constant 0 : index
    %c0_51 = arith.constant 0 : index
    %210 = vector.load %arg10[%c0_50, %c0_51] : memref<1x96xf32, #tpu.memory_space<vmem>>, vector<1x96xf32>
    %211 = vector.broadcast %210 : vector<1x96xf32> to vector<16x96xf32>
    %212 = arith.addf %209, %211 : vector<16x96xf32>
    %c0_52 = arith.constant 0 : index
    %c0_53 = arith.constant 0 : index
    %213 = vector.load %arg9[%c0_52, %c0_53] : memref<32x96xf32, #tpu.memory_space<vmem>>, vector<32x96xf32>
    %c0_54 = arith.constant 0 : index
    %c0_55 = arith.constant 0 : index
    %214 = vector.load %arg11[%c0_54, %c0_55] : memref<1x32xf32, #tpu.memory_space<vmem>>, vector<1x32xf32>
    %215 = vector.shape_cast %214 : vector<1x32xf32> to vector<1x32xf32>
    %216 = vector.broadcast %215 : vector<1x32xf32> to vector<2x32xf32>
    %cst_56 = arith.constant 0.000000e+00 : f32
    %217 = vector.broadcast %cst_56 : f32 to vector<2x32xf32>
    %218 = vector.extract_strided_slice %212 {offsets = [0, 0], sizes = [2, 96], strides = [1, 1]} : vector<16x96xf32> to vector<2x96xf32>
    %cst_57 = arith.constant dense<0.000000e+00> : vector<2x96xf32>
    %219 = tpu.matmul %217, %213, %cst_57 {dimension_numbers = #tpu.dot_dimension_numbers<[1], [0], [0], [1], [0, 0, 1, 1], [], []>} : vector<2x32xf32>, vector<32x96xf32>, vector<2x96xf32> -> vector<2x96xf32>
    %220 = vector.extract_strided_slice %218 {offsets = [0, 0], sizes = [2, 64], strides = [1, 1]} : vector<2x96xf32> to vector<2x64xf32>
    %221 = vector.extract_strided_slice %219 {offsets = [0, 0], sizes = [2, 64], strides = [1, 1]} : vector<2x96xf32> to vector<2x64xf32>
    %222 = arith.addf %220, %221 : vector<2x64xf32>
    %223 = arith.negf %222 : vector<2x64xf32>
    %224 = math.exp %223 : vector<2x64xf32>
    %cst_58 = arith.constant 1.000000e+00 : f32
    %225 = vector.broadcast %cst_58 : f32 to vector<2x64xf32>
    %226 = arith.addf %225, %224 : vector<2x64xf32>
    %227 = arith.divf %225, %226 : vector<2x64xf32>
    %228 = vector.extract_strided_slice %227 {offsets = [0, 0], sizes = [2, 32], strides = [1, 1]} : vector<2x64xf32> to vector<2x32xf32>
    %229 = vector.extract_strided_slice %227 {offsets = [0, 32], sizes = [2, 32], strides = [1, 1]} : vector<2x64xf32> to vector<2x32xf32>
    %230 = vector.extract_strided_slice %218 {offsets = [0, 64], sizes = [2, 32], strides = [1, 1]} : vector<2x96xf32> to vector<2x32xf32>
    %231 = vector.extract_strided_slice %219 {offsets = [0, 64], sizes = [2, 32], strides = [1, 1]} : vector<2x96xf32> to vector<2x32xf32>
    %232 = arith.addf %231, %216 : vector<2x32xf32>
    %233 = arith.mulf %228, %232 : vector<2x32xf32>
    %234 = arith.addf %230, %233 : vector<2x32xf32>
    %235 = math.tanh %234 : vector<2x32xf32>
    %cst_59 = arith.constant 1.000000e+00 : f32
    %236 = vector.broadcast %cst_59 : f32 to vector<2x32xf32>
    %237 = arith.subf %236, %229 : vector<2x32xf32>
    %238 = arith.mulf %237, %235 : vector<2x32xf32>
    %239 = arith.mulf %229, %217 : vector<2x32xf32>
    %240 = arith.addf %238, %239 : vector<2x32xf32>
    %c1_i32 = arith.constant 1 : i32
    %241 = arith.cmpi eq, %2, %c1_i32 : i32
    %242 = arith.extui %241 : i1 to i32
    %243 = arith.sitofp %242 : i32 to f32
    %244 = vector.broadcast %243 : f32 to vector<2x32xf32>
    %245 = arith.mulf %244, %240 : vector<2x32xf32>
    %cst_60 = arith.constant 1.000000e+00 : f32
    %246 = arith.subf %cst_60, %243 : f32
    %247 = vector.broadcast %246 : f32 to vector<2x32xf32>
    %248 = arith.mulf %247, %3 : vector<2x32xf32>
    %249 = arith.addf %245, %248 : vector<2x32xf32>
    %250 = vector.extract_strided_slice %212 {offsets = [2, 0], sizes = [2, 96], strides = [1, 1]} : vector<16x96xf32> to vector<2x96xf32>
    %cst_61 = arith.constant dense<0.000000e+00> : vector<2x96xf32>
    %251 = tpu.matmul %240, %213, %cst_61 {dimension_numbers = #tpu.dot_dimension_numbers<[1], [0], [0], [1], [0, 0, 1, 1], [], []>} : vector<2x32xf32>, vector<32x96xf32>, vector<2x96xf32> -> vector<2x96xf32>
    %252 = vector.extract_strided_slice %250 {offsets = [0, 0], sizes = [2, 64], strides = [1, 1]} : vector<2x96xf32> to vector<2x64xf32>
    %253 = vector.extract_strided_slice %251 {offsets = [0, 0], sizes = [2, 64], strides = [1, 1]} : vector<2x96xf32> to vector<2x64xf32>
    %254 = arith.addf %252, %253 : vector<2x64xf32>
    %255 = arith.negf %254 : vector<2x64xf32>
    %256 = math.exp %255 : vector<2x64xf32>
    %cst_62 = arith.constant 1.000000e+00 : f32
    %257 = vector.broadcast %cst_62 : f32 to vector<2x64xf32>
    %258 = arith.addf %257, %256 : vector<2x64xf32>
    %259 = arith.divf %257, %258 : vector<2x64xf32>
    %260 = vector.extract_strided_slice %259 {offsets = [0, 0], sizes = [2, 32], strides = [1, 1]} : vector<2x64xf32> to vector<2x32xf32>
    %261 = vector.extract_strided_slice %259 {offsets = [0, 32], sizes = [2, 32], strides = [1, 1]} : vector<2x64xf32> to vector<2x32xf32>
    %262 = vector.extract_strided_slice %250 {offsets = [0, 64], sizes = [2, 32], strides = [1, 1]} : vector<2x96xf32> to vector<2x32xf32>
    %263 = vector.extract_strided_slice %251 {offsets = [0, 64], sizes = [2, 32], strides = [1, 1]} : vector<2x96xf32> to vector<2x32xf32>
    %264 = arith.addf %263, %216 : vector<2x32xf32>
    %265 = arith.mulf %260, %264 : vector<2x32xf32>
    %266 = arith.addf %262, %265 : vector<2x32xf32>
    %267 = math.tanh %266 : vector<2x32xf32>
    %cst_63 = arith.constant 1.000000e+00 : f32
    %268 = vector.broadcast %cst_63 : f32 to vector<2x32xf32>
    %269 = arith.subf %268, %261 : vector<2x32xf32>
    %270 = arith.mulf %269, %267 : vector<2x32xf32>
    %271 = arith.mulf %261, %240 : vector<2x32xf32>
    %272 = arith.addf %270, %271 : vector<2x32xf32>
    %c2_i32 = arith.constant 2 : i32
    %273 = arith.cmpi eq, %2, %c2_i32 : i32
    %274 = arith.extui %273 : i1 to i32
    %275 = arith.sitofp %274 : i32 to f32
    %276 = vector.broadcast %275 : f32 to vector<2x32xf32>
    %277 = arith.mulf %276, %272 : vector<2x32xf32>
    %cst_64 = arith.constant 1.000000e+00 : f32
    %278 = arith.subf %cst_64, %275 : f32
    %279 = vector.broadcast %278 : f32 to vector<2x32xf32>
    %280 = arith.mulf %279, %249 : vector<2x32xf32>
    %281 = arith.addf %277, %280 : vector<2x32xf32>
    %282 = vector.extract_strided_slice %212 {offsets = [4, 0], sizes = [2, 96], strides = [1, 1]} : vector<16x96xf32> to vector<2x96xf32>
    %cst_65 = arith.constant dense<0.000000e+00> : vector<2x96xf32>
    %283 = tpu.matmul %272, %213, %cst_65 {dimension_numbers = #tpu.dot_dimension_numbers<[1], [0], [0], [1], [0, 0, 1, 1], [], []>} : vector<2x32xf32>, vector<32x96xf32>, vector<2x96xf32> -> vector<2x96xf32>
    %284 = vector.extract_strided_slice %282 {offsets = [0, 0], sizes = [2, 64], strides = [1, 1]} : vector<2x96xf32> to vector<2x64xf32>
    %285 = vector.extract_strided_slice %283 {offsets = [0, 0], sizes = [2, 64], strides = [1, 1]} : vector<2x96xf32> to vector<2x64xf32>
    %286 = arith.addf %284, %285 : vector<2x64xf32>
    %287 = arith.negf %286 : vector<2x64xf32>
    %288 = math.exp %287 : vector<2x64xf32>
    %cst_66 = arith.constant 1.000000e+00 : f32
    %289 = vector.broadcast %cst_66 : f32 to vector<2x64xf32>
    %290 = arith.addf %289, %288 : vector<2x64xf32>
    %291 = arith.divf %289, %290 : vector<2x64xf32>
    %292 = vector.extract_strided_slice %291 {offsets = [0, 0], sizes = [2, 32], strides = [1, 1]} : vector<2x64xf32> to vector<2x32xf32>
    %293 = vector.extract_strided_slice %291 {offsets = [0, 32], sizes = [2, 32], strides = [1, 1]} : vector<2x64xf32> to vector<2x32xf32>
    %294 = vector.extract_strided_slice %282 {offsets = [0, 64], sizes = [2, 32], strides = [1, 1]} : vector<2x96xf32> to vector<2x32xf32>
    %295 = vector.extract_strided_slice %283 {offsets = [0, 64], sizes = [2, 32], strides = [1, 1]} : vector<2x96xf32> to vector<2x32xf32>
    %296 = arith.addf %295, %216 : vector<2x32xf32>
    %297 = arith.mulf %292, %296 : vector<2x32xf32>
    %298 = arith.addf %294, %297 : vector<2x32xf32>
    %299 = math.tanh %298 : vector<2x32xf32>
    %cst_67 = arith.constant 1.000000e+00 : f32
    %300 = vector.broadcast %cst_67 : f32 to vector<2x32xf32>
    %301 = arith.subf %300, %293 : vector<2x32xf32>
    %302 = arith.mulf %301, %299 : vector<2x32xf32>
    %303 = arith.mulf %293, %272 : vector<2x32xf32>
    %304 = arith.addf %302, %303 : vector<2x32xf32>
    %c3_i32 = arith.constant 3 : i32
    %305 = arith.cmpi eq, %2, %c3_i32 : i32
    %306 = arith.extui %305 : i1 to i32
    %307 = arith.sitofp %306 : i32 to f32
    %308 = vector.broadcast %307 : f32 to vector<2x32xf32>
    %309 = arith.mulf %308, %304 : vector<2x32xf32>
    %cst_68 = arith.constant 1.000000e+00 : f32
    %310 = arith.subf %cst_68, %307 : f32
    %311 = vector.broadcast %310 : f32 to vector<2x32xf32>
    %312 = arith.mulf %311, %281 : vector<2x32xf32>
    %313 = arith.addf %309, %312 : vector<2x32xf32>
    %314 = vector.extract_strided_slice %212 {offsets = [6, 0], sizes = [2, 96], strides = [1, 1]} : vector<16x96xf32> to vector<2x96xf32>
    %cst_69 = arith.constant dense<0.000000e+00> : vector<2x96xf32>
    %315 = tpu.matmul %304, %213, %cst_69 {dimension_numbers = #tpu.dot_dimension_numbers<[1], [0], [0], [1], [0, 0, 1, 1], [], []>} : vector<2x32xf32>, vector<32x96xf32>, vector<2x96xf32> -> vector<2x96xf32>
    %316 = vector.extract_strided_slice %314 {offsets = [0, 0], sizes = [2, 64], strides = [1, 1]} : vector<2x96xf32> to vector<2x64xf32>
    %317 = vector.extract_strided_slice %315 {offsets = [0, 0], sizes = [2, 64], strides = [1, 1]} : vector<2x96xf32> to vector<2x64xf32>
    %318 = arith.addf %316, %317 : vector<2x64xf32>
    %319 = arith.negf %318 : vector<2x64xf32>
    %320 = math.exp %319 : vector<2x64xf32>
    %cst_70 = arith.constant 1.000000e+00 : f32
    %321 = vector.broadcast %cst_70 : f32 to vector<2x64xf32>
    %322 = arith.addf %321, %320 : vector<2x64xf32>
    %323 = arith.divf %321, %322 : vector<2x64xf32>
    %324 = vector.extract_strided_slice %323 {offsets = [0, 0], sizes = [2, 32], strides = [1, 1]} : vector<2x64xf32> to vector<2x32xf32>
    %325 = vector.extract_strided_slice %323 {offsets = [0, 32], sizes = [2, 32], strides = [1, 1]} : vector<2x64xf32> to vector<2x32xf32>
    %326 = vector.extract_strided_slice %314 {offsets = [0, 64], sizes = [2, 32], strides = [1, 1]} : vector<2x96xf32> to vector<2x32xf32>
    %327 = vector.extract_strided_slice %315 {offsets = [0, 64], sizes = [2, 32], strides = [1, 1]} : vector<2x96xf32> to vector<2x32xf32>
    %328 = arith.addf %327, %216 : vector<2x32xf32>
    %329 = arith.mulf %324, %328 : vector<2x32xf32>
    %330 = arith.addf %326, %329 : vector<2x32xf32>
    %331 = math.tanh %330 : vector<2x32xf32>
    %cst_71 = arith.constant 1.000000e+00 : f32
    %332 = vector.broadcast %cst_71 : f32 to vector<2x32xf32>
    %333 = arith.subf %332, %325 : vector<2x32xf32>
    %334 = arith.mulf %333, %331 : vector<2x32xf32>
    %335 = arith.mulf %325, %304 : vector<2x32xf32>
    %336 = arith.addf %334, %335 : vector<2x32xf32>
    %c4_i32 = arith.constant 4 : i32
    %337 = arith.cmpi eq, %2, %c4_i32 : i32
    %338 = arith.extui %337 : i1 to i32
    %339 = arith.sitofp %338 : i32 to f32
    %340 = vector.broadcast %339 : f32 to vector<2x32xf32>
    %341 = arith.mulf %340, %336 : vector<2x32xf32>
    %cst_72 = arith.constant 1.000000e+00 : f32
    %342 = arith.subf %cst_72, %339 : f32
    %343 = vector.broadcast %342 : f32 to vector<2x32xf32>
    %344 = arith.mulf %343, %313 : vector<2x32xf32>
    %345 = arith.addf %341, %344 : vector<2x32xf32>
    %346 = vector.extract_strided_slice %212 {offsets = [8, 0], sizes = [2, 96], strides = [1, 1]} : vector<16x96xf32> to vector<2x96xf32>
    %cst_73 = arith.constant dense<0.000000e+00> : vector<2x96xf32>
    %347 = tpu.matmul %336, %213, %cst_73 {dimension_numbers = #tpu.dot_dimension_numbers<[1], [0], [0], [1], [0, 0, 1, 1], [], []>} : vector<2x32xf32>, vector<32x96xf32>, vector<2x96xf32> -> vector<2x96xf32>
    %348 = vector.extract_strided_slice %346 {offsets = [0, 0], sizes = [2, 64], strides = [1, 1]} : vector<2x96xf32> to vector<2x64xf32>
    %349 = vector.extract_strided_slice %347 {offsets = [0, 0], sizes = [2, 64], strides = [1, 1]} : vector<2x96xf32> to vector<2x64xf32>
    %350 = arith.addf %348, %349 : vector<2x64xf32>
    %351 = arith.negf %350 : vector<2x64xf32>
    %352 = math.exp %351 : vector<2x64xf32>
    %cst_74 = arith.constant 1.000000e+00 : f32
    %353 = vector.broadcast %cst_74 : f32 to vector<2x64xf32>
    %354 = arith.addf %353, %352 : vector<2x64xf32>
    %355 = arith.divf %353, %354 : vector<2x64xf32>
    %356 = vector.extract_strided_slice %355 {offsets = [0, 0], sizes = [2, 32], strides = [1, 1]} : vector<2x64xf32> to vector<2x32xf32>
    %357 = vector.extract_strided_slice %355 {offsets = [0, 32], sizes = [2, 32], strides = [1, 1]} : vector<2x64xf32> to vector<2x32xf32>
    %358 = vector.extract_strided_slice %346 {offsets = [0, 64], sizes = [2, 32], strides = [1, 1]} : vector<2x96xf32> to vector<2x32xf32>
    %359 = vector.extract_strided_slice %347 {offsets = [0, 64], sizes = [2, 32], strides = [1, 1]} : vector<2x96xf32> to vector<2x32xf32>
    %360 = arith.addf %359, %216 : vector<2x32xf32>
    %361 = arith.mulf %356, %360 : vector<2x32xf32>
    %362 = arith.addf %358, %361 : vector<2x32xf32>
    %363 = math.tanh %362 : vector<2x32xf32>
    %cst_75 = arith.constant 1.000000e+00 : f32
    %364 = vector.broadcast %cst_75 : f32 to vector<2x32xf32>
    %365 = arith.subf %364, %357 : vector<2x32xf32>
    %366 = arith.mulf %365, %363 : vector<2x32xf32>
    %367 = arith.mulf %357, %336 : vector<2x32xf32>
    %368 = arith.addf %366, %367 : vector<2x32xf32>
    %c5_i32 = arith.constant 5 : i32
    %369 = arith.cmpi eq, %2, %c5_i32 : i32
    %370 = arith.extui %369 : i1 to i32
    %371 = arith.sitofp %370 : i32 to f32
    %372 = vector.broadcast %371 : f32 to vector<2x32xf32>
    %373 = arith.mulf %372, %368 : vector<2x32xf32>
    %cst_76 = arith.constant 1.000000e+00 : f32
    %374 = arith.subf %cst_76, %371 : f32
    %375 = vector.broadcast %374 : f32 to vector<2x32xf32>
    %376 = arith.mulf %375, %345 : vector<2x32xf32>
    %377 = arith.addf %373, %376 : vector<2x32xf32>
    %378 = vector.extract_strided_slice %212 {offsets = [10, 0], sizes = [2, 96], strides = [1, 1]} : vector<16x96xf32> to vector<2x96xf32>
    %cst_77 = arith.constant dense<0.000000e+00> : vector<2x96xf32>
    %379 = tpu.matmul %368, %213, %cst_77 {dimension_numbers = #tpu.dot_dimension_numbers<[1], [0], [0], [1], [0, 0, 1, 1], [], []>} : vector<2x32xf32>, vector<32x96xf32>, vector<2x96xf32> -> vector<2x96xf32>
    %380 = vector.extract_strided_slice %378 {offsets = [0, 0], sizes = [2, 64], strides = [1, 1]} : vector<2x96xf32> to vector<2x64xf32>
    %381 = vector.extract_strided_slice %379 {offsets = [0, 0], sizes = [2, 64], strides = [1, 1]} : vector<2x96xf32> to vector<2x64xf32>
    %382 = arith.addf %380, %381 : vector<2x64xf32>
    %383 = arith.negf %382 : vector<2x64xf32>
    %384 = math.exp %383 : vector<2x64xf32>
    %cst_78 = arith.constant 1.000000e+00 : f32
    %385 = vector.broadcast %cst_78 : f32 to vector<2x64xf32>
    %386 = arith.addf %385, %384 : vector<2x64xf32>
    %387 = arith.divf %385, %386 : vector<2x64xf32>
    %388 = vector.extract_strided_slice %387 {offsets = [0, 0], sizes = [2, 32], strides = [1, 1]} : vector<2x64xf32> to vector<2x32xf32>
    %389 = vector.extract_strided_slice %387 {offsets = [0, 32], sizes = [2, 32], strides = [1, 1]} : vector<2x64xf32> to vector<2x32xf32>
    %390 = vector.extract_strided_slice %378 {offsets = [0, 64], sizes = [2, 32], strides = [1, 1]} : vector<2x96xf32> to vector<2x32xf32>
    %391 = vector.extract_strided_slice %379 {offsets = [0, 64], sizes = [2, 32], strides = [1, 1]} : vector<2x96xf32> to vector<2x32xf32>
    %392 = arith.addf %391, %216 : vector<2x32xf32>
    %393 = arith.mulf %388, %392 : vector<2x32xf32>
    %394 = arith.addf %390, %393 : vector<2x32xf32>
    %395 = math.tanh %394 : vector<2x32xf32>
    %cst_79 = arith.constant 1.000000e+00 : f32
    %396 = vector.broadcast %cst_79 : f32 to vector<2x32xf32>
    %397 = arith.subf %396, %389 : vector<2x32xf32>
    %398 = arith.mulf %397, %395 : vector<2x32xf32>
    %399 = arith.mulf %389, %368 : vector<2x32xf32>
    %400 = arith.addf %398, %399 : vector<2x32xf32>
    %c6_i32 = arith.constant 6 : i32
    %401 = arith.cmpi eq, %2, %c6_i32 : i32
    %402 = arith.extui %401 : i1 to i32
    %403 = arith.sitofp %402 : i32 to f32
    %404 = vector.broadcast %403 : f32 to vector<2x32xf32>
    %405 = arith.mulf %404, %400 : vector<2x32xf32>
    %cst_80 = arith.constant 1.000000e+00 : f32
    %406 = arith.subf %cst_80, %403 : f32
    %407 = vector.broadcast %406 : f32 to vector<2x32xf32>
    %408 = arith.mulf %407, %377 : vector<2x32xf32>
    %409 = arith.addf %405, %408 : vector<2x32xf32>
    %410 = vector.extract_strided_slice %212 {offsets = [12, 0], sizes = [2, 96], strides = [1, 1]} : vector<16x96xf32> to vector<2x96xf32>
    %cst_81 = arith.constant dense<0.000000e+00> : vector<2x96xf32>
    %411 = tpu.matmul %400, %213, %cst_81 {dimension_numbers = #tpu.dot_dimension_numbers<[1], [0], [0], [1], [0, 0, 1, 1], [], []>} : vector<2x32xf32>, vector<32x96xf32>, vector<2x96xf32> -> vector<2x96xf32>
    %412 = vector.extract_strided_slice %410 {offsets = [0, 0], sizes = [2, 64], strides = [1, 1]} : vector<2x96xf32> to vector<2x64xf32>
    %413 = vector.extract_strided_slice %411 {offsets = [0, 0], sizes = [2, 64], strides = [1, 1]} : vector<2x96xf32> to vector<2x64xf32>
    %414 = arith.addf %412, %413 : vector<2x64xf32>
    %415 = arith.negf %414 : vector<2x64xf32>
    %416 = math.exp %415 : vector<2x64xf32>
    %cst_82 = arith.constant 1.000000e+00 : f32
    %417 = vector.broadcast %cst_82 : f32 to vector<2x64xf32>
    %418 = arith.addf %417, %416 : vector<2x64xf32>
    %419 = arith.divf %417, %418 : vector<2x64xf32>
    %420 = vector.extract_strided_slice %419 {offsets = [0, 0], sizes = [2, 32], strides = [1, 1]} : vector<2x64xf32> to vector<2x32xf32>
    %421 = vector.extract_strided_slice %419 {offsets = [0, 32], sizes = [2, 32], strides = [1, 1]} : vector<2x64xf32> to vector<2x32xf32>
    %422 = vector.extract_strided_slice %410 {offsets = [0, 64], sizes = [2, 32], strides = [1, 1]} : vector<2x96xf32> to vector<2x32xf32>
    %423 = vector.extract_strided_slice %411 {offsets = [0, 64], sizes = [2, 32], strides = [1, 1]} : vector<2x96xf32> to vector<2x32xf32>
    %424 = arith.addf %423, %216 : vector<2x32xf32>
    %425 = arith.mulf %420, %424 : vector<2x32xf32>
    %426 = arith.addf %422, %425 : vector<2x32xf32>
    %427 = math.tanh %426 : vector<2x32xf32>
    %cst_83 = arith.constant 1.000000e+00 : f32
    %428 = vector.broadcast %cst_83 : f32 to vector<2x32xf32>
    %429 = arith.subf %428, %421 : vector<2x32xf32>
    %430 = arith.mulf %429, %427 : vector<2x32xf32>
    %431 = arith.mulf %421, %400 : vector<2x32xf32>
    %432 = arith.addf %430, %431 : vector<2x32xf32>
    %c7_i32 = arith.constant 7 : i32
    %433 = arith.cmpi eq, %2, %c7_i32 : i32
    %434 = arith.extui %433 : i1 to i32
    %435 = arith.sitofp %434 : i32 to f32
    %436 = vector.broadcast %435 : f32 to vector<2x32xf32>
    %437 = arith.mulf %436, %432 : vector<2x32xf32>
    %cst_84 = arith.constant 1.000000e+00 : f32
    %438 = arith.subf %cst_84, %435 : f32
    %439 = vector.broadcast %438 : f32 to vector<2x32xf32>
    %440 = arith.mulf %439, %409 : vector<2x32xf32>
    %441 = arith.addf %437, %440 : vector<2x32xf32>
    %442 = vector.extract_strided_slice %212 {offsets = [14, 0], sizes = [2, 96], strides = [1, 1]} : vector<16x96xf32> to vector<2x96xf32>
    %cst_85 = arith.constant dense<0.000000e+00> : vector<2x96xf32>
    %443 = tpu.matmul %432, %213, %cst_85 {dimension_numbers = #tpu.dot_dimension_numbers<[1], [0], [0], [1], [0, 0, 1, 1], [], []>} : vector<2x32xf32>, vector<32x96xf32>, vector<2x96xf32> -> vector<2x96xf32>
    %444 = vector.extract_strided_slice %442 {offsets = [0, 0], sizes = [2, 64], strides = [1, 1]} : vector<2x96xf32> to vector<2x64xf32>
    %445 = vector.extract_strided_slice %443 {offsets = [0, 0], sizes = [2, 64], strides = [1, 1]} : vector<2x96xf32> to vector<2x64xf32>
    %446 = arith.addf %444, %445 : vector<2x64xf32>
    %447 = arith.negf %446 : vector<2x64xf32>
    %448 = math.exp %447 : vector<2x64xf32>
    %cst_86 = arith.constant 1.000000e+00 : f32
    %449 = vector.broadcast %cst_86 : f32 to vector<2x64xf32>
    %450 = arith.addf %449, %448 : vector<2x64xf32>
    %451 = arith.divf %449, %450 : vector<2x64xf32>
    %452 = vector.extract_strided_slice %451 {offsets = [0, 0], sizes = [2, 32], strides = [1, 1]} : vector<2x64xf32> to vector<2x32xf32>
    %453 = vector.extract_strided_slice %451 {offsets = [0, 32], sizes = [2, 32], strides = [1, 1]} : vector<2x64xf32> to vector<2x32xf32>
    %454 = vector.extract_strided_slice %442 {offsets = [0, 64], sizes = [2, 32], strides = [1, 1]} : vector<2x96xf32> to vector<2x32xf32>
    %455 = vector.extract_strided_slice %443 {offsets = [0, 64], sizes = [2, 32], strides = [1, 1]} : vector<2x96xf32> to vector<2x32xf32>
    %456 = arith.addf %455, %216 : vector<2x32xf32>
    %457 = arith.mulf %452, %456 : vector<2x32xf32>
    %458 = arith.addf %454, %457 : vector<2x32xf32>
    %459 = math.tanh %458 : vector<2x32xf32>
    %cst_87 = arith.constant 1.000000e+00 : f32
    %460 = vector.broadcast %cst_87 : f32 to vector<2x32xf32>
    %461 = arith.subf %460, %453 : vector<2x32xf32>
    %462 = arith.mulf %461, %459 : vector<2x32xf32>
    %463 = arith.mulf %453, %432 : vector<2x32xf32>
    %464 = arith.addf %462, %463 : vector<2x32xf32>
    %c8_i32 = arith.constant 8 : i32
    %465 = arith.cmpi eq, %2, %c8_i32 : i32
    %466 = arith.extui %465 : i1 to i32
    %467 = arith.sitofp %466 : i32 to f32
    %468 = vector.broadcast %467 : f32 to vector<2x32xf32>
    %469 = arith.mulf %468, %464 : vector<2x32xf32>
    %cst_88 = arith.constant 1.000000e+00 : f32
    %470 = arith.subf %cst_88, %467 : f32
    %471 = vector.broadcast %470 : f32 to vector<2x32xf32>
    %472 = arith.mulf %471, %441 : vector<2x32xf32>
    %473 = arith.addf %469, %472 : vector<2x32xf32>
    %c0_89 = arith.constant 0 : index
    %c0_90 = arith.constant 0 : index
    %474 = vector.load %arg3[%c0_89, %c0_90] : memref<2x1xi32, #tpu.memory_space<vmem>>, vector<2x1xi32>
    %475 = vector.broadcast %2 : i32 to vector<2x1xi32>
    %476 = arith.cmpi eq, %474, %475 : vector<2x1xi32>
    %477 = arith.extui %476 : vector<2x1xi1> to vector<2x1xi32>
    %478 = arith.sitofp %477 : vector<2x1xi32> to vector<2x1xf32>
    %479 = vector.broadcast %478 : vector<2x1xf32> to vector<2x32xf32>
    %480 = arith.mulf %473, %479 : vector<2x32xf32>
    %c0_91 = arith.constant 0 : index
    %c0_92 = arith.constant 0 : index
    %481 = vector.load %arg12[%c0_91, %c0_92] : memref<32x18xf32, #tpu.memory_space<vmem>>, vector<32x18xf32>
    %cst_93 = arith.constant dense<0.000000e+00> : vector<2x18xf32>
    %482 = tpu.matmul %480, %481, %cst_93 {dimension_numbers = #tpu.dot_dimension_numbers<[1], [0], [0], [1], [0, 0, 1, 1], [], []>} : vector<2x32xf32>, vector<32x18xf32>, vector<2x18xf32> -> vector<2x18xf32>
    %c0_94 = arith.constant 0 : index
    %c0_95 = arith.constant 0 : index
    %483 = vector.load %arg13[%c0_94, %c0_95] : memref<1x18xf32, #tpu.memory_space<vmem>>, vector<1x18xf32>
    %484 = vector.broadcast %483 : vector<1x18xf32> to vector<2x18xf32>
    %485 = arith.addf %482, %484 : vector<2x18xf32>
    %c0_96 = arith.constant 0 : index
    %c0_97 = arith.constant 0 : index
    %486 = vector.load %arg14[%c0_96, %c0_97] : memref<2x18xf32, #tpu.memory_space<vmem>>, vector<2x18xf32>
    tpu.vector_store %arg14[%c0_96, %c0_97], %485 {strides = array<i32>} : memref<2x18xf32, #tpu.memory_space<vmem>>, vector<2x18xf32>,
    return
  }
  func.func @transform_0(%arg0: i32, %arg1: memref<2xi32, #tpu.memory_space<smem>>) -> (i32, i32) {
    %c0_i32 = arith.constant 0 : i32
    %c0_i32_0 = arith.constant 0 : i32
    %c0_i32_1 = arith.constant 0 : i32
    return %c0_i32, %c0_i32_0 : i32, i32
  }
  func.func @transform_1(%arg0: i32, %arg1: memref<2xi32, #tpu.memory_space<smem>>) -> (i32, i32) {
    %c0_i32 = arith.constant 0 : i32
    %c0_i32_0 = arith.constant 0 : i32
    %c0_i32_1 = arith.constant 0 : i32
    return %c0_i32, %c0_i32_0 : i32, i32
  }
  func.func @transform_2(%arg0: i32, %arg1: memref<2xi32, #tpu.memory_space<smem>>) -> (i32, i32) {
    %c0_i32 = arith.constant 0 : i32
    %c0_i32_0 = arith.constant 0 : i32
    %c0_i32_1 = arith.constant 0 : i32
    return %c0_i32, %c0_i32_0 : i32, i32
  }
  func.func @transform_3(%arg0: i32, %arg1: memref<2xi32, #tpu.memory_space<smem>>) -> (i32, i32) {
    %c0_i32 = arith.constant 0 : i32
    %c0_i32_0 = arith.constant 0 : i32
    %c0_i32_1 = arith.constant 0 : i32
    return %c0_i32, %c0_i32_0 : i32, i32
  }
  func.func @transform_4(%arg0: i32, %arg1: memref<2xi32, #tpu.memory_space<smem>>) -> (i32, i32) {
    %c0_i32 = arith.constant 0 : i32
    %c0_i32_0 = arith.constant 0 : i32
    %c0_i32_1 = arith.constant 0 : i32
    return %c0_i32, %c0_i32_0 : i32, i32
  }
  func.func @transform_5(%arg0: i32, %arg1: memref<2xi32, #tpu.memory_space<smem>>) -> (i32, i32) {
    %c0_i32 = arith.constant 0 : i32
    %c0_i32_0 = arith.constant 0 : i32
    %c0_i32_1 = arith.constant 0 : i32
    return %c0_i32, %c0_i32_0 : i32, i32
  }
  func.func @transform_6(%arg0: i32, %arg1: memref<2xi32, #tpu.memory_space<smem>>) -> (i32, i32) {
    %c0_i32 = arith.constant 0 : i32
    %c0_i32_0 = arith.constant 0 : i32
    %c0_i32_1 = arith.constant 0 : i32
    return %c0_i32, %c0_i32_0 : i32, i32
  }
  func.func @transform_7(%arg0: i32, %arg1: memref<2xi32, #tpu.memory_space<smem>>) -> (i32, i32) {
    %c0_i32 = arith.constant 0 : i32
    %c0_i32_0 = arith.constant 0 : i32
    %c0_i32_1 = arith.constant 0 : i32
    return %c0_i32, %c0_i32_0 : i32, i32
  }
  func.func @transform_8(%arg0: i32, %arg1: memref<2xi32, #tpu.memory_space<smem>>) -> (i32, i32) {
    %c0_i32 = arith.constant 0 : i32
    %c0_i32_0 = arith.constant 0 : i32
    %c0_i32_1 = arith.constant 0 : i32
    return %c0_i32, %c0_i32_0 : i32, i32
  }
  func.func @transform_9(%arg0: i32, %arg1: memref<2xi32, #tpu.memory_space<smem>>) -> (i32, i32) {
    %c0_i32 = arith.constant 0 : i32
    %c0_i32_0 = arith.constant 0 : i32
    %c0_i32_1 = arith.constant 0 : i32
    return %c0_i32, %c0_i32_0 : i32, i32
  }
  func.func @transform_10(%arg0: i32, %arg1: memref<2xi32, #tpu.memory_space<smem>>) -> (i32, i32) {
    %c0_i32 = arith.constant 0 : i32
    %c0_i32_0 = arith.constant 0 : i32
    %c0_i32_1 = arith.constant 0 : i32
    return %c0_i32, %c0_i32_0 : i32, i32
  }
  func.func @transform_11(%arg0: i32, %arg1: memref<2xi32, #tpu.memory_space<smem>>) -> (i32, i32) {
    %c0_i32 = arith.constant 0 : i32
    %c0_i32_0 = arith.constant 0 : i32
    %c0_i32_1 = arith.constant 0 : i32
    return %c0_i32, %c0_i32_0 : i32, i32
  }
  func.func @transform_12(%arg0: i32, %arg1: memref<2xi32, #tpu.memory_space<smem>>) -> (i32, i32) {
    %c0_i32 = arith.constant 0 : i32
    %c0_i32_0 = arith.constant 0 : i32
    %c0_i32_1 = arith.constant 0 : i32
    return %c0_i32, %c0_i32_0 : i32, i32
  }
}

</mosaic_0001>

<llo_original>
// kernel: tpu_custom_call.1
$region0: #{tpu_custom_call.1}
  #allocation0 [shape = 'u32[]', space=smem, size = 0x4, offset = 0x4, fixed_abs, tag = 'smem constant byte address 0x4 - core index']
  #allocation1 [shape = 'u32[72,128]{1,0:T(1,128)}', space=vmem, size = 0x9000, scoped, tag = 'internal scratch']
  #allocation2 [shape = 'f32[16,32]{1,0:T(8,128)}', space=vmem, size = 0x2000, scoped, tag = 'scratch operand']
  #allocation3 [shape = 's32[1]{0}', space=sflag, size = 0x4, scoped, tag = 'scoped memory for tpu_custom_call.1']
  #allocation4 [shape = 'u8[512]{0}', space=smem, size = 0x200, scoped, tag = 'prefetched SMEM operand 0']
  %s0 = inlined_call_operand.vmem [shape: s32[2], index: 0, kind: input, shape index: {}]
  %s1 = inlined_call_operand.vmem [shape: f32[16,32], index: 1, kind: input, shape index: {}]
  %s2 = inlined_call_operand.vmem [shape: s32[2,1], index: 2, kind: input, shape index: {}]
  %s3 = inlined_call_operand.vmem [shape: f32[32,96], index: 3, kind: input, shape index: {}]
  %s4 = inlined_call_operand.hbm [shape: f32[32,96], index: 4, kind: input, shape index: {}]
  %s5 = inlined_call_operand.vmem [shape: f32[1,96], index: 5, kind: input, shape index: {}]
  %s6 = inlined_call_operand.vmem [shape: f32[1,32], index: 6, kind: input, shape index: {}]
  %s7 = inlined_call_operand.hbm [shape: f32[32,96], index: 7, kind: input, shape index: {}]
  %s8 = inlined_call_operand.hbm [shape: f32[32,96], index: 8, kind: input, shape index: {}]
  %s9 = inlined_call_operand.vmem [shape: f32[1,96], index: 9, kind: input, shape index: {}]
  %s10 = inlined_call_operand.vmem [shape: f32[1,32], index: 10, kind: input, shape index: {}]
  %s11 = inlined_call_operand.vmem [shape: f32[32,18], index: 11, kind: input, shape index: {}]
  %s12 = inlined_call_operand.vmem [shape: f32[1,18], index: 12, kind: input, shape index: {}]
  %s13 = inlined_call_operand.hbm [shape: f32[2,18], index: 13, kind: output, shape index: {}]
  %s14 = sld [smem:[#allocation0]]
  $region70: #{tpu_custom_call.1} parent=0
    _
  %s16 = ssub.s32 1, %s14
  %s17 = scalar_select 0, %s16, %s14
  %s19 = sshll.u32 %s0, 4
  %s20 = int_to_ptr.vmem [resolvable:$true] %s19
  %22 = dma.vmem_to_smem %s20, 16, [#allocation4], [#allocation3]
  %24 = dma.done [#allocation3], 16
  %25 = sfence
  $region1: #{tpu_custom_call.1} parent=0
    #allocation5 [shape = 'u8[16384]{0}', space=vmem, size = 0x4000, scoped, tag = 'input window, operand 4, single buffered']
    #allocation6 [shape = 's32[1]{0}', space=sflag, size = 0x4, scoped, tag = 'scoped memory for tpu_custom_call.1']
    #allocation7 [shape = 's32[1]{0}', space=sflag, size = 0x4, scoped, tag = 'scoped memory for tpu_custom_call.1']
    #allocation8 [shape = 'u8[16384]{0}', space=vmem, size = 0x4000, scoped, tag = 'input window, operand 7, single buffered']
    #allocation9 [shape = 's32[1]{0}', space=sflag, size = 0x4, scoped, tag = 'scoped memory for tpu_custom_call.1']
    #allocation10 [shape = 'u8[16384]{0}', space=vmem, size = 0x4000, scoped, tag = 'input window, operand 8, single buffered']
    #allocation11 [shape = 'u8[1024]{0}', space=vmem, size = 0x400, scoped, tag = 'output window, operand 0, single buffered']
    %26 = vsyncpa [#allocation6], 0
    %27 = vsyncpa [#allocation9], 0
    %28 = vsyncpa [#allocation7], 0
    // Predicated region
    $region2: #{tpu_custom_call.1} parent=1 // pred_check
      _
    $region3: #{tpu_custom_call.1} parent=1 // pred_check_branch
      %30 = sbr.rel (0) target = $region5
    $region4: #{tpu_custom_call.1} parent=1 // pred_region
      _
    $region5: #{tpu_custom_call.1} parent=1 // pred_fallthru
      _
    // Predicated region
    $region6: #{tpu_custom_call.1} parent=1 // pred_check
      _
    $region7: #{tpu_custom_call.1} parent=1 // pred_check_branch
      %32 = sbr.rel (0) target = $region9
    $region8: #{tpu_custom_call.1} parent=1 // pred_region
      _
    $region9: #{tpu_custom_call.1} parent=1 // pred_fallthru
      _
    // Predicated region
    $region10: #{tpu_custom_call.1} parent=1 // pred_check
      _
    $region11: #{tpu_custom_call.1} parent=1 // pred_check_branch
      %34 = sbr.rel (0) target = $region13
    $region12: #{tpu_custom_call.1} parent=1 // pred_region
      _
    $region13: #{tpu_custom_call.1} parent=1 // pred_fallthru
      _
    // Predicated region
    $region14: #{tpu_custom_call.1} parent=1 // pred_check
      _
    $region15: #{tpu_custom_call.1} parent=1 // pred_check_branch
      %36 = sbr.rel (0) target = $region17
    $region16: #{tpu_custom_call.1} parent=1 // pred_region
      %38 = vsyncadd [#allocation6], 0
      %s39 = sshll.u32 %s4, 4
      %s40 = int_to_ptr.hbm [resolvable:$true] %s39
      %s41 = sshll.u32 [#allocation5], 4
      %s42 = int_to_ptr.vmem [resolvable:$true] %s41
      %47 = dma.hbm_to_vmem [thread:$0]  %s40, 512, %s42, [#allocation6], 128, 128, 8
    $region17: #{tpu_custom_call.1} parent=1 // pred_fallthru
      _
    // Predicated region
    $region18: #{tpu_custom_call.1} parent=1 // pred_check
      _
    $region19: #{tpu_custom_call.1} parent=1 // pred_check_branch
      %49 = sbr.rel (0) target = $region21
    $region20: #{tpu_custom_call.1} parent=1 // pred_region
      _
    $region21: #{tpu_custom_call.1} parent=1 // pred_fallthru
      _
    // Predicated region
    $region22: #{tpu_custom_call.1} parent=1 // pred_check
      _
    $region23: #{tpu_custom_call.1} parent=1 // pred_check_branch
      %51 = sbr.rel (0) target = $region25
    $region24: #{tpu_custom_call.1} parent=1 // pred_region
      _
    $region25: #{tpu_custom_call.1} parent=1 // pred_fallthru
      _
    // Predicated region
    $region26: #{tpu_custom_call.1} parent=1 // pred_check
      _
    $region27: #{tpu_custom_call.1} parent=1 // pred_check_branch
      %53 = sbr.rel (0) target = $region29
    $region28: #{tpu_custom_call.1} parent=1 // pred_region
      %55 = vsyncadd [#allocation9], 0
      %s56 = sshll.u32 %s7, 4
      %s57 = int_to_ptr.hbm [resolvable:$true] %s56
      %s58 = sshll.u32 [#allocation8], 4
      %s59 = int_to_ptr.vmem [resolvable:$true] %s58
      %64 = dma.hbm_to_vmem [thread:$0]  %s57, 512, %s59, [#allocation9], 128, 128, 8
    $region29: #{tpu_custom_call.1} parent=1 // pred_fallthru
      _
    // Predicated region
    $region30: #{tpu_custom_call.1} parent=1 // pred_check
      _
    $region31: #{tpu_custom_call.1} parent=1 // pred_check_branch
      %66 = sbr.rel (0) target = $region33
    $region32: #{tpu_custom_call.1} parent=1 // pred_region
      %68 = vsyncadd [#allocation9], 0
      %s69 = sshll.u32 %s8, 4
      %s70 = int_to_ptr.hbm [resolvable:$true] %s69
      %s71 = sshll.u32 [#allocation10], 4
      %s72 = int_to_ptr.vmem [resolvable:$true] %s71
      %77 = dma.hbm_to_vmem [thread:$0]  %s70, 512, %s72, [#allocation9], 128, 128, 8
    $region33: #{tpu_custom_call.1} parent=1 // pred_fallthru
      _
    // Predicated region
    $region34: #{tpu_custom_call.1} parent=1 // pred_check
      _
    $region35: #{tpu_custom_call.1} parent=1 // pred_check_branch
      %79 = sbr.rel (0) target = $region37
    $region36: #{tpu_custom_call.1} parent=1 // pred_region
      _
    $region37: #{tpu_custom_call.1} parent=1 // pred_fallthru
      _
    // Predicated region
    $region38: #{tpu_custom_call.1} parent=1 // pred_check
      _
    $region39: #{tpu_custom_call.1} parent=1 // pred_check_branch
      %81 = sbr.rel (0) target = $region41
    $region40: #{tpu_custom_call.1} parent=1 // pred_region
      _
    $region41: #{tpu_custom_call.1} parent=1 // pred_fallthru
      _
    // Predicated region
    $region42: #{tpu_custom_call.1} parent=1 // pred_check
      _
    $region43: #{tpu_custom_call.1} parent=1 // pred_check_branch
      %83 = sbr.rel (0) target = $region45
    $region44: #{tpu_custom_call.1} parent=1 // pred_region
      _
    $region45: #{tpu_custom_call.1} parent=1 // pred_fallthru
      _
    // Predicated region
    $region46: #{tpu_custom_call.1} parent=1 // pred_check
      _
    $region47: #{tpu_custom_call.1} parent=1 // pred_check_branch
      %85 = sbr.rel (0) target = $region49
    $region48: #{tpu_custom_call.1} parent=1 // pred_region
      _
    $region49: #{tpu_custom_call.1} parent=1 // pred_fallthru
      _
    // Predicated region
    $region50: #{tpu_custom_call.1} parent=1 // pred_check
      _
    $region51: #{tpu_custom_call.1} parent=1 // pred_check_branch
      %87 = sbr.rel (0) target = $region53
    $region52: #{tpu_custom_call.1} parent=1 // pred_region
      %89 = dma.done [#allocation6], 512
    $region53: #{tpu_custom_call.1} parent=1 // pred_fallthru
      _
    // Predicated region
    $region54: #{tpu_custom_call.1} parent=1 // pred_check
      _
    $region55: #{tpu_custom_call.1} parent=1 // pred_check_branch
      %91 = sbr.rel (0) target = $region57
    $region56: #{tpu_custom_call.1} parent=1 // pred_region
      %93 = dma.done [#allocation9], 512
    $region57: #{tpu_custom_call.1} parent=1 // pred_fallthru
      _
    // Predicated region
    $region58: #{tpu_custom_call.1} parent=1 // pred_check
      _
    $region59: #{tpu_custom_call.1} parent=1 // pred_check_branch
      %95 = sbr.rel (0) target = $region61
    $region60: #{tpu_custom_call.1} parent=1 // pred_region
      %97 = dma.done [#allocation9], 512
    $region61: #{tpu_custom_call.1} parent=1 // pred_fallthru
      _
    %s98 = sld [smem:[#allocation4]]
    %s99 = sld [smem:[#allocation4 + $0x1]]
    %p100 = scmp.gt.s32.totalorder %s98, %s99
    %s101 = scalar_select %p100, %s98, %s99
    %v102 = vld [vmem:[%s1] sm:$0xff]
    %v103 = vld [vmem:[%s1 + $0x8] sm:$0xff]
    %v104 = vld [vmem:[%s3] sm:$0xff]
    %v105 = vld [vmem:[%s3 + $0x8] sm:$0xff]
    %v106 = vld [vmem:[%s3 + $0x10] sm:$0xff]
    %v107 = vld [vmem:[%s3 + $0x18] sm:$0xff]
    %v108 = vld [vmem:[%s5] sm:$0x1]
    %v110 = vperm.slane %v108, 0
    %vm112 = vcmask 261120
    %v114 = vsel %vm112, %v102, 0
    %v117 = vsel %vm112, %v103, 0
    %119 = vmatpush.msra.mxu0 0.0
    %120 = vmatpush.msra.mxu0 0.0
    %121 = vmatpush.msra.mxu0 0.0
    %122 = vmatpush.msra.mxu0 0.0
    %123 = vmatpush.msra.mxu0 0.0
    %124 = vmatpush.msra.mxu0 0.0
    %125 = vmatpush.msra.mxu0 0.0
    %126 = vmatpush.msra.mxu0 0.0
    %127 = vmatpush.msra.mxu0 0.0
    %128 = vmatpush.msra.mxu0 0.0
    %129 = vmatpush.msra.mxu0 0.0
    %130 = vmatpush.msra.mxu0 0.0
    %131 = vmatpush.msra.mxu0 %v107
    %132 = vmatpush.msra.mxu0 %v106
    %133 = vmatpush.msra.mxu0 %v105
    %134 = vmatpush.msra.mxu0 %v104
    %135 = vmatmul.f32.gmra.mxu0 %v114
    %v136 = vpop.f32.mrf.mxu0
    %v137 = vadd.f32 %v110, %v136
    %138 = vmatmul.f32.gmra.mxu0 %v117
    %v139 = vpop.f32.mrf.mxu0
    %v140 = vadd.f32 %v110, %v139
    %141 = vdwg.mxu0
    %v142 = vld [vmem:[#allocation5] sm:$0xff]
    %v143 = vld [vmem:[#allocation5 + $0x8] sm:$0xff]
    %v144 = vld [vmem:[#allocation5 + $0x10] sm:$0xff]
    %v145 = vld [vmem:[#allocation5 + $0x18] sm:$0xff]
    %v146 = vld [vmem:[%s6] sm:$0x1]
    %v148 = vperm.slane %v146, 0
    %v150 = vsel %vm112, 0.0, 0
    %152 = vmatpush.msra.mxu0 0.0
    %153 = vmatpush.msra.mxu0 0.0
    %154 = vmatpush.msra.mxu0 0.0
    %155 = vmatpush.msra.mxu0 0.0
    %156 = vmatpush.msra.mxu0 0.0
    %157 = vmatpush.msra.mxu0 0.0
    %158 = vmatpush.msra.mxu0 0.0
    %159 = vmatpush.msra.mxu0 0.0
    %160 = vmatpush.msra.mxu0 0.0
    %161 = vmatpush.msra.mxu0 0.0
    %162 = vmatpush.msra.mxu0 0.0
    %163 = vmatpush.msra.mxu0 0.0
    %164 = vmatpush.msra.mxu0 %v145
    %165 = vmatpush.msra.mxu0 %v144
    %166 = vmatpush.msra.mxu0 %v143
    %167 = vmatpush.msra.mxu0 %v142
    %168 = vmatmul.f32.gmra.mxu0 %v150
    %v169 = vpop.f32.mrf.mxu0
    %v170 = vadd.f32 0.0, %v169
    %171 = vdwg.mxu0
    %v172 = vadd.f32 %v137, %v170
    %v173 = vxor.u32 %v172, 2147483648
    %v174 = vmul.f32 %v173, 1.442695
    %v175 = vpow.pop %v174
    %v176 = vadd.f32 %v175, 1.0
    %v177 = vrcp.pop %v176
    %v178 = vmul.f32 %v176, %v177
    %v179 = vsub.f32 1.0, %v178
    %v180 = vmul.f32 %v177, %v179
    %v181 = vadd.f32 %v177, %v180
    %vm182 = vweird.f32 %v176
    %vm183 = vweird.f32 %v177
    %vm184 = vmor %vm182, %vm183
    %v185 = vsel %vm184, %v177, %v181
    %v186 = vand.u32 2147483647, %v176
    %vm187 = vcmp.eq.f32.partialorder %v186, 8.507059e+37
    %v188 = vand.u32 %v176, 2147483648
    %v189 = vor.u32 1.1754944e-38, %v188
    %v190 = vsel %vm187, %v189, %v185
    %v191 = vmul.f32 1.0, %v190
    %192 = vrot.lane.b32.xlu0 %v148, 64
    %v193 = vpop.permute.xlu0 %192
    %v195 = vadd.f32 %v170, %v193
    %197 = vrot.lane.b32.xlu0 %v195, 64
    %v198 = vpop.permute.xlu0 %197
    %v200 = vmul.f32 %v191, %v198
    %202 = vrot.lane.b32.xlu0 %v200, 64
    %v203 = vpop.permute.xlu0 %202
    %v205 = vadd.f32 %v137, %v203
    %v206 = vtanh.pop %v205
    %v207 = vsub.f32 1.0, %v191
    %209 = vrot.lane.b32.xlu0 %v206, 96
    %v210 = vpop.permute.xlu0 %209
    %v212 = vmul.f32 %v207, %v210
    %v213 = vmul.f32 %v191, 0.0
    %v214 = vadd.f32 %v212, %v213
    %216 = vrot.lane.b32.xlu0 %v214, 96
    %v217 = vpop.permute.xlu0 %216
    %vm219 = vcmask 254976
    %220 = vst.msk [vmem:[#allocation2] sm:$0x3] %vm219, %v217
    %v221 = vsel %vm112, %v217, 0
    %223 = vmatpush.msra.mxu0 0.0
    %224 = vmatpush.msra.mxu0 0.0
    %225 = vmatpush.msra.mxu0 0.0
    %226 = vmatpush.msra.mxu0 0.0
    %227 = vmatpush.msra.mxu0 0.0
    %228 = vmatpush.msra.mxu0 0.0
    %229 = vmatpush.msra.mxu0 0.0
    %230 = vmatpush.msra.mxu0 0.0
    %231 = vmatpush.msra.mxu0 0.0
    %232 = vmatpush.msra.mxu0 0.0
    %233 = vmatpush.msra.mxu0 0.0
    %234 = vmatpush.msra.mxu0 0.0
    %235 = vmatpush.msra.mxu0 %v145
    %236 = vmatpush.msra.mxu0 %v144
    %237 = vmatpush.msra.mxu0 %v143
    %238 = vmatpush.msra.mxu0 %v142
    %239 = vmatmul.f32.gmra.mxu0 %v221
    %v240 = vpop.f32.mrf.mxu0
    %v241 = vadd.f32 0.0, %v240
    %242 = vdwg.mxu0
    %v244 = vrot.slane %v241, 6
    %v246 = vadd.f32 %v137, %v244
    %v247 = vxor.u32 %v246, 2147483648
    %v248 = vmul.f32 %v247, 1.442695
    %v249 = vpow.pop %v248
    %v250 = vadd.f32 %v249, 1.0
    %v251 = vrcp.pop %v250
    %v252 = vmul.f32 %v250, %v251
    %v253 = vsub.f32 1.0, %v252
    %v254 = vmul.f32 %v251, %v253
    %v255 = vadd.f32 %v251, %v254
    %vm256 = vweird.f32 %v250
    %vm257 = vweird.f32 %v251
    %vm258 = vmor %vm256, %vm257
    %v259 = vsel %vm258, %v251, %v255
    %v260 = vand.u32 2147483647, %v250
    %vm261 = vcmp.eq.f32.partialorder %v260, 8.507059e+37
    %v262 = vand.u32 %v250, 2147483648
    %v263 = vor.u32 1.1754944e-38, %v262
    %v264 = vsel %vm261, %v263, %v259
    %v265 = vmul.f32 1.0, %v264
    %v266 = vadd.f32 %v241, %v193
    %v268 = vrot.slane %v266, 6
    %269 = vrot.lane.b32.xlu0 %v268, 64
    %v270 = vpop.permute.xlu0 %269
    %v272 = vmul.f32 %v265, %v270
    %274 = vrot.lane.b32.xlu0 %v272, 64
    %v275 = vpop.permute.xlu0 %274
    %v277 = vadd.f32 %v137, %v275
    %v278 = vtanh.pop %v277
    %v279 = vsub.f32 1.0, %v265
    %281 = vrot.lane.b32.xlu0 %v278, 96
    %v282 = vpop.permute.xlu0 %281
    %v284 = vmul.f32 %v279, %v282
    %v285 = vrot.slane %v214, 6
    %v287 = vmul.f32 %v265, %v285
    %v288 = vadd.f32 %v284, %v287
    %290 = vrot.lane.b32.xlu0 %v288, 96
    %v291 = vpop.permute.xlu0 %290
    %vm293 = vcmask 257026
    %294 = vst.msk [vmem:[#allocation2] sm:$0xc] %vm293, %v291
    %v295 = vrot.slane %v288, 2
    %296 = vrot.lane.b32.xlu0 %v295, 96
    %v297 = vpop.permute.xlu0 %296
    %v298 = vsel %vm112, %v297, 0
    %300 = vmatpush.msra.mxu0 0.0
    %301 = vmatpush.msra.mxu0 0.0
    %302 = vmatpush.msra.mxu0 0.0
    %303 = vmatpush.msra.mxu0 0.0
    %304 = vmatpush.msra.mxu0 0.0
    %305 = vmatpush.msra.mxu0 0.0
    %306 = vmatpush.msra.mxu0 0.0
    %307 = vmatpush.msra.mxu0 0.0
    %308 = vmatpush.msra.mxu0 0.0
    %309 = vmatpush.msra.mxu0 0.0
    %310 = vmatpush.msra.mxu0 0.0
    %311 = vmatpush.msra.mxu0 0.0
    %312 = vmatpush.msra.mxu0 %v145
    %313 = vmatpush.msra.mxu0 %v144
    %314 = vmatpush.msra.mxu0 %v143
    %315 = vmatpush.msra.mxu0 %v142
    %316 = vmatmul.f32.gmra.mxu0 %v298
    %v317 = vpop.f32.mrf.mxu0
    %v318 = vadd.f32 0.0, %v317
    %319 = vdwg.mxu0
    %v321 = vrot.slane %v318, 4
    %v323 = vadd.f32 %v137, %v321
    %v324 = vxor.u32 %v323, 2147483648
    %v325 = vmul.f32 %v324, 1.442695
    %v326 = vpow.pop %v325
    %v327 = vadd.f32 %v326, 1.0
    %v328 = vrcp.pop %v327
    %v329 = vmul.f32 %v327, %v328
    %v330 = vsub.f32 1.0, %v329
    %v331 = vmul.f32 %v328, %v330
    %v332 = vadd.f32 %v328, %v331
    %vm333 = vweird.f32 %v327
    %vm334 = vweird.f32 %v328
    %vm335 = vmor %vm333, %vm334
    %v336 = vsel %vm335, %v328, %v332
    %v337 = vand.u32 2147483647, %v327
    %vm338 = vcmp.eq.f32.partialorder %v337, 8.507059e+37
    %v339 = vand.u32 %v327, 2147483648
    %v340 = vor.u32 1.1754944e-38, %v339
    %v341 = vsel %vm338, %v340, %v336
    %v342 = vmul.f32 1.0, %v341
    %v343 = vadd.f32 %v318, %v193
    %v345 = vrot.slane %v343, 4
    %346 = vrot.lane.b32.xlu0 %v345, 64
    %v347 = vpop.permute.xlu0 %346
    %v349 = vmul.f32 %v342, %v347
    %351 = vrot.lane.b32.xlu0 %v349, 64
    %v352 = vpop.permute.xlu0 %351
    %v354 = vadd.f32 %v137, %v352
    %v355 = vtanh.pop %v354
    %v356 = vsub.f32 1.0, %v342
    %358 = vrot.lane.b32.xlu0 %v355, 96
    %v359 = vpop.permute.xlu0 %358
    %v361 = vmul.f32 %v356, %v359
    %v362 = vrot.slane %v288, 6
    %v364 = vmul.f32 %v342, %v362
    %v365 = vadd.f32 %v361, %v364
    %367 = vrot.lane.b32.xlu0 %v365, 96
    %v368 = vpop.permute.xlu0 %367
    %vm370 = vcmask 259076
    %371 = vst.msk [vmem:[#allocation2] sm:$0x30] %vm370, %v368
    %v372 = vrot.slane %v365, 4
    %373 = vrot.lane.b32.xlu0 %v372, 96
    %v374 = vpop.permute.xlu0 %373
    %v375 = vsel %vm112, %v374, 0
    %377 = vmatpush.msra.mxu0 0.0
    %378 = vmatpush.msra.mxu0 0.0
    %379 = vmatpush.msra.mxu0 0.0
    %380 = vmatpush.msra.mxu0 0.0
    %381 = vmatpush.msra.mxu0 0.0
    %382 = vmatpush.msra.mxu0 0.0
    %383 = vmatpush.msra.mxu0 0.0
    %384 = vmatpush.msra.mxu0 0.0
    %385 = vmatpush.msra.mxu0 0.0
    %386 = vmatpush.msra.mxu0 0.0
    %387 = vmatpush.msra.mxu0 0.0
    %388 = vmatpush.msra.mxu0 0.0
    %389 = vmatpush.msra.mxu0 %v145
    %390 = vmatpush.msra.mxu0 %v144
    %391 = vmatpush.msra.mxu0 %v143
    %392 = vmatpush.msra.mxu0 %v142
    %393 = vmatmul.f32.gmra.mxu0 %v375
    %v394 = vpop.f32.mrf.mxu0
    %v395 = vadd.f32 0.0, %v394
    %396 = vdwg.mxu0
    %v398 = vrot.slane %v395, 2
    %v400 = vadd.f32 %v137, %v398
    %v401 = vxor.u32 %v400, 2147483648
    %v402 = vmul.f32 %v401, 1.442695
    %v403 = vpow.pop %v402
    %v404 = vadd.f32 %v403, 1.0
    %v405 = vrcp.pop %v404
    %v406 = vmul.f32 %v404, %v405
    %v407 = vsub.f32 1.0, %v406
    %v408 = vmul.f32 %v405, %v407
    %v409 = vadd.f32 %v405, %v408
    %vm410 = vweird.f32 %v404
    %vm411 = vweird.f32 %v405
    %vm412 = vmor %vm410, %vm411
    %v413 = vsel %vm412, %v405, %v409
    %v414 = vand.u32 2147483647, %v404
    %vm415 = vcmp.eq.f32.partialorder %v414, 8.507059e+37
    %v416 = vand.u32 %v404, 2147483648
    %v417 = vor.u32 1.1754944e-38, %v416
    %v418 = vsel %vm415, %v417, %v413
    %v419 = vmul.f32 1.0, %v418
    %v420 = vadd.f32 %v395, %v193
    %v422 = vrot.slane %v420, 2
    %423 = vrot.lane.b32.xlu0 %v422, 64
    %v424 = vpop.permute.xlu0 %423
    %v426 = vmul.f32 %v419, %v424
    %428 = vrot.lane.b32.xlu0 %v426, 64
    %v429 = vpop.permute.xlu0 %428
    %v431 = vadd.f32 %v137, %v429
    %v432 = vtanh.pop %v431
    %v433 = vsub.f32 1.0, %v419
    %435 = vrot.lane.b32.xlu0 %v432, 96
    %v436 = vpop.permute.xlu0 %435
    %v438 = vmul.f32 %v433, %v436
    %v439 = vrot.slane %v365, 6
    %v441 = vmul.f32 %v419, %v439
    %v442 = vadd.f32 %v438, %v441
    %444 = vrot.lane.b32.xlu0 %v442, 96
    %v445 = vpop.permute.xlu0 %444
    %vm447 = vcmask 261126
    %448 = vst.msk [vmem:[#allocation2] sm:$0xc0] %vm447, %v445
    %v449 = vrot.slane %v442, 6
    %450 = vrot.lane.b32.xlu0 %v449, 96
    %v451 = vpop.permute.xlu0 %450
    %v452 = vsel %vm112, %v451, 0
    %454 = vmatpush.msra.mxu0 0.0
    %455 = vmatpush.msra.mxu0 0.0
    %456 = vmatpush.msra.mxu0 0.0
    %457 = vmatpush.msra.mxu0 0.0
    %458 = vmatpush.msra.mxu0 0.0
    %459 = vmatpush.msra.mxu0 0.0
    %460 = vmatpush.msra.mxu0 0.0
    %461 = vmatpush.msra.mxu0 0.0
    %462 = vmatpush.msra.mxu0 0.0
    %463 = vmatpush.msra.mxu0 0.0
    %464 = vmatpush.msra.mxu0 0.0
    %465 = vmatpush.msra.mxu0 0.0
    %466 = vmatpush.msra.mxu0 %v145
    %467 = vmatpush.msra.mxu0 %v144
    %468 = vmatpush.msra.mxu0 %v143
    %469 = vmatpush.msra.mxu0 %v142
    %470 = vmatmul.f32.gmra.mxu0 %v452
    %v471 = vpop.f32.mrf.mxu0
    %v472 = vadd.f32 0.0, %v471
    %473 = vdwg.mxu0
    %v474 = vadd.f32 %v140, %v472
    %v475 = vxor.u32 %v474, 2147483648
    %v476 = vmul.f32 %v475, 1.442695
    %v477 = vpow.pop %v476
    %v478 = vadd.f32 %v477, 1.0
    %v479 = vrcp.pop %v478
    %v480 = vmul.f32 %v478, %v479
    %v481 = vsub.f32 1.0, %v480
    %v482 = vmul.f32 %v479, %v481
    %v483 = vadd.f32 %v479, %v482
    %vm484 = vweird.f32 %v478
    %vm485 = vweird.f32 %v479
    %vm486 = vmor %vm484, %vm485
    %v487 = vsel %vm486, %v479, %v483
    %v488 = vand.u32 2147483647, %v478
    %vm489 = vcmp.eq.f32.partialorder %v488, 8.507059e+37
    %v490 = vand.u32 %v478, 2147483648
    %v491 = vor.u32 1.1754944e-38, %v490
    %v492 = vsel %vm489, %v491, %v487
    %v493 = vmul.f32 1.0, %v492
    %v494 = vadd.f32 %v472, %v193
    %496 = vrot.lane.b32.xlu0 %v494, 64
    %v497 = vpop.permute.xlu0 %496
    %v499 = vmul.f32 %v493, %v497
    %501 = vrot.lane.b32.xlu0 %v499, 64
    %v502 = vpop.permute.xlu0 %501
    %v504 = vadd.f32 %v140, %v502
    %v505 = vtanh.pop %v504
    %v506 = vsub.f32 1.0, %v493
    %508 = vrot.lane.b32.xlu0 %v505, 96
    %v509 = vpop.permute.xlu0 %508
    %v511 = vmul.f32 %v506, %v509
    %v513 = vmul.f32 %v493, %v449
    %v514 = vadd.f32 %v511, %v513
    %516 = vrot.lane.b32.xlu0 %v514, 96
    %v517 = vpop.permute.xlu0 %516
    %519 = vst.msk [vmem:[#allocation2 + $0x8] sm:$0x3] %vm219, %v517
    %v520 = vsel %vm112, %v517, 0
    %522 = vmatpush.msra.mxu0 0.0
    %523 = vmatpush.msra.mxu0 0.0
    %524 = vmatpush.msra.mxu0 0.0
    %525 = vmatpush.msra.mxu0 0.0
    %526 = vmatpush.msra.mxu0 0.0
    %527 = vmatpush.msra.mxu0 0.0
    %528 = vmatpush.msra.mxu0 0.0
    %529 = vmatpush.msra.mxu0 0.0
    %530 = vmatpush.msra.mxu0 0.0
    %531 = vmatpush.msra.mxu0 0.0
    %532 = vmatpush.msra.mxu0 0.0
    %533 = vmatpush.msra.mxu0 0.0
    %534 = vmatpush.msra.mxu0 %v145
    %535 = vmatpush.msra.mxu0 %v144
    %536 = vmatpush.msra.mxu0 %v143
    %537 = vmatpush.msra.mxu0 %v142
    %538 = vmatmul.f32.gmra.mxu0 %v520
    %v539 = vpop.f32.mrf.mxu0
    %v540 = vadd.f32 0.0, %v539
    %541 = vdwg.mxu0
    %v543 = vrot.slane %v540, 6
    %v545 = vadd.f32 %v140, %v543
    %v546 = vxor.u32 %v545, 2147483648
    %v547 = vmul.f32 %v546, 1.442695
    %v548 = vpow.pop %v547
    %v549 = vadd.f32 %v548, 1.0
    %v550 = vrcp.pop %v549
    %v551 = vmul.f32 %v549, %v550
    %v552 = vsub.f32 1.0, %v551
    %v553 = vmul.f32 %v550, %v552
    %v554 = vadd.f32 %v550, %v553
    %vm555 = vweird.f32 %v549
    %vm556 = vweird.f32 %v550
    %vm557 = vmor %vm555, %vm556
    %v558 = vsel %vm557, %v550, %v554
    %v559 = vand.u32 2147483647, %v549
    %vm560 = vcmp.eq.f32.partialorder %v559, 8.507059e+37
    %v561 = vand.u32 %v549, 2147483648
    %v562 = vor.u32 1.1754944e-38, %v561
    %v563 = vsel %vm560, %v562, %v558
    %v564 = vmul.f32 1.0, %v563
    %v565 = vadd.f32 %v540, %v193
    %v567 = vrot.slane %v565, 6
    %568 = vrot.lane.b32.xlu0 %v567, 64
    %v569 = vpop.permute.xlu0 %568
    %v571 = vmul.f32 %v564, %v569
    %573 = vrot.lane.b32.xlu0 %v571, 64
    %v574 = vpop.permute.xlu0 %573
    %v576 = vadd.f32 %v140, %v574
    %v577 = vtanh.pop %v576
    %v578 = vsub.f32 1.0, %v564
    %580 = vrot.lane.b32.xlu0 %v577, 96
    %v581 = vpop.permute.xlu0 %580
    %v583 = vmul.f32 %v578, %v581
    %v584 = vrot.slane %v514, 6
    %v586 = vmul.f32 %v564, %v584
    %v587 = vadd.f32 %v583, %v586
    %589 = vrot.lane.b32.xlu0 %v587, 96
    %v590 = vpop.permute.xlu0 %589
    %592 = vst.msk [vmem:[#allocation2 + $0x8] sm:$0xc] %vm293, %v590
    %v593 = vrot.slane %v587, 2
    %594 = vrot.lane.b32.xlu0 %v593, 96
    %v595 = vpop.permute.xlu0 %594
    %v596 = vsel %vm112, %v595, 0
    %598 = vmatpush.msra.mxu0 0.0
    %599 = vmatpush.msra.mxu0 0.0
    %600 = vmatpush.msra.mxu0 0.0
    %601 = vmatpush.msra.mxu0 0.0
    %602 = vmatpush.msra.mxu0 0.0
    %603 = vmatpush.msra.mxu0 0.0
    %604 = vmatpush.msra.mxu0 0.0
    %605 = vmatpush.msra.mxu0 0.0
    %606 = vmatpush.msra.mxu0 0.0
    %607 = vmatpush.msra.mxu0 0.0
    %608 = vmatpush.msra.mxu0 0.0
    %609 = vmatpush.msra.mxu0 0.0
    %610 = vmatpush.msra.mxu0 %v145
    %611 = vmatpush.msra.mxu0 %v144
    %612 = vmatpush.msra.mxu0 %v143
    %613 = vmatpush.msra.mxu0 %v142
    %614 = vmatmul.f32.gmra.mxu0 %v596
    %v615 = vpop.f32.mrf.mxu0
    %v616 = vadd.f32 0.0, %v615
    %617 = vdwg.mxu0
    %v619 = vrot.slane %v616, 4
    %v621 = vadd.f32 %v140, %v619
    %v622 = vxor.u32 %v621, 2147483648
    %v623 = vmul.f32 %v622, 1.442695
    %v624 = vpow.pop %v623
    %v625 = vadd.f32 %v624, 1.0
    %v626 = vrcp.pop %v625
    %v627 = vmul.f32 %v625, %v626
    %v628 = vsub.f32 1.0, %v627
    %v629 = vmul.f32 %v626, %v628
    %v630 = vadd.f32 %v626, %v629
    %vm631 = vweird.f32 %v625
    %vm632 = vweird.f32 %v626
    %vm633 = vmor %vm631, %vm632
    %v634 = vsel %vm633, %v626, %v630
    %v635 = vand.u32 2147483647, %v625
    %vm636 = vcmp.eq.f32.partialorder %v635, 8.507059e+37
    %v637 = vand.u32 %v625, 2147483648
    %v638 = vor.u32 1.1754944e-38, %v637
    %v639 = vsel %vm636, %v638, %v634
    %v640 = vmul.f32 1.0, %v639
    %v641 = vadd.f32 %v616, %v193
    %v643 = vrot.slane %v641, 4
    %644 = vrot.lane.b32.xlu0 %v643, 64
    %v645 = vpop.permute.xlu0 %644
    %v647 = vmul.f32 %v640, %v645
    %649 = vrot.lane.b32.xlu0 %v647, 64
    %v650 = vpop.permute.xlu0 %649
    %v652 = vadd.f32 %v140, %v650
    %v653 = vtanh.pop %v652
    %v654 = vsub.f32 1.0, %v640
    %656 = vrot.lane.b32.xlu0 %v653, 96
    %v657 = vpop.permute.xlu0 %656
    %v659 = vmul.f32 %v654, %v657
    %v660 = vrot.slane %v587, 6
    %v662 = vmul.f32 %v640, %v660
    %v663 = vadd.f32 %v659, %v662
    %665 = vrot.lane.b32.xlu0 %v663, 96
    %v666 = vpop.permute.xlu0 %665
    %668 = vst.msk [vmem:[#allocation2 + $0x8] sm:$0x30] %vm370, %v666
    %v669 = vrot.slane %v663, 4
    %670 = vrot.lane.b32.xlu0 %v669, 96
    %v671 = vpop.permute.xlu0 %670
    %v672 = vsel %vm112, %v671, 0
    %674 = vmatpush.msra.mxu0 0.0
    %675 = vmatpush.msra.mxu0 0.0
    %676 = vmatpush.msra.mxu0 0.0
    %677 = vmatpush.msra.mxu0 0.0
    %678 = vmatpush.msra.mxu0 0.0
    %679 = vmatpush.msra.mxu0 0.0
    %680 = vmatpush.msra.mxu0 0.0
    %681 = vmatpush.msra.mxu0 0.0
    %682 = vmatpush.msra.mxu0 0.0
    %683 = vmatpush.msra.mxu0 0.0
    %684 = vmatpush.msra.mxu0 0.0
    %685 = vmatpush.msra.mxu0 0.0
    %686 = vmatpush.msra.mxu0 %v145
    %687 = vmatpush.msra.mxu0 %v144
    %688 = vmatpush.msra.mxu0 %v143
    %689 = vmatpush.msra.mxu0 %v142
    %690 = vmatmul.f32.gmra.mxu0 %v672
    %v691 = vpop.f32.mrf.mxu0
    %v692 = vadd.f32 0.0, %v691
    %693 = vdwg.mxu0
    %v695 = vrot.slane %v692, 2
    %v697 = vadd.f32 %v140, %v695
    %v698 = vxor.u32 %v697, 2147483648
    %v699 = vmul.f32 %v698, 1.442695
    %v700 = vpow.pop %v699
    %v701 = vadd.f32 %v700, 1.0
    %v702 = vrcp.pop %v701
    %v703 = vmul.f32 %v701, %v702
    %v704 = vsub.f32 1.0, %v703
    %v705 = vmul.f32 %v702, %v704
    %v706 = vadd.f32 %v702, %v705
    %vm707 = vweird.f32 %v701
    %vm708 = vweird.f32 %v702
    %vm709 = vmor %vm707, %vm708
    %v710 = vsel %vm709, %v702, %v706
    %v711 = vand.u32 2147483647, %v701
    %vm712 = vcmp.eq.f32.partialorder %v711, 8.507059e+37
    %v713 = vand.u32 %v701, 2147483648
    %v714 = vor.u32 1.1754944e-38, %v713
    %v715 = vsel %vm712, %v714, %v710
    %v716 = vmul.f32 1.0, %v715
    %v717 = vadd.f32 %v692, %v193
    %v719 = vrot.slane %v717, 2
    %720 = vrot.lane.b32.xlu0 %v719, 64
    %v721 = vpop.permute.xlu0 %720
    %v723 = vmul.f32 %v716, %v721
    %725 = vrot.lane.b32.xlu0 %v723, 64
    %v726 = vpop.permute.xlu0 %725
    %v728 = vadd.f32 %v140, %v726
    %v729 = vtanh.pop %v728
    %v730 = vsub.f32 1.0, %v716
    %732 = vrot.lane.b32.xlu0 %v729, 96
    %v733 = vpop.permute.xlu0 %732
    %v735 = vmul.f32 %v730, %v733
    %v736 = vrot.slane %v663, 6
    %v738 = vmul.f32 %v716, %v736
    %v739 = vadd.f32 %v735, %v738
    %741 = vrot.lane.b32.xlu0 %v739, 96
    %v742 = vpop.permute.xlu0 %741
    %744 = vst.msk [vmem:[#allocation2 + $0x8] sm:$0xc0] %vm447, %v742
    %v745 = vld [vmem:[#allocation2] sm:$0xff]
    %v746 = vld [vmem:[#allocation2 + $0x8] sm:$0xff]
    %v747 = vld [vmem:[#allocation8] sm:$0xff]
    %v748 = vld [vmem:[#allocation8 + $0x8] sm:$0xff]
    %v749 = vld [vmem:[#allocation8 + $0x10] sm:$0xff]
    %v750 = vld [vmem:[#allocation8 + $0x18] sm:$0xff]
    %v751 = vld [vmem:[%s9] sm:$0x1]
    %v753 = vperm.slane %v751, 0
    %v756 = vsel %vm112, %v745, 0
    %v759 = vsel %vm112, %v746, 0
    %761 = vmatpush.msra.mxu0 0.0
    %762 = vmatpush.msra.mxu0 0.0
    %763 = vmatpush.msra.mxu0 0.0
    %764 = vmatpush.msra.mxu0 0.0
    %765 = vmatpush.msra.mxu0 0.0
    %766 = vmatpush.msra.mxu0 0.0
    %767 = vmatpush.msra.mxu0 0.0
    %768 = vmatpush.msra.mxu0 0.0
    %769 = vmatpush.msra.mxu0 0.0
    %770 = vmatpush.msra.mxu0 0.0
    %771 = vmatpush.msra.mxu0 0.0
    %772 = vmatpush.msra.mxu0 0.0
    %773 = vmatpush.msra.mxu0 %v750
    %774 = vmatpush.msra.mxu0 %v749
    %775 = vmatpush.msra.mxu0 %v748
    %776 = vmatpush.msra.mxu0 %v747
    %777 = vmatmul.f32.gmra.mxu0 %v756
    %v778 = vpop.f32.mrf.mxu0
    %v779 = vadd.f32 %v753, %v778
    %780 = vmatmul.f32.gmra.mxu0 %v759
    %v781 = vpop.f32.mrf.mxu0
    %v782 = vadd.f32 %v753, %v781
    %783 = vdwg.mxu0
    %v784 = vld [vmem:[#allocation10] sm:$0xff]
    %v785 = vld [vmem:[#allocation10 + $0x8] sm:$0xff]
    %v786 = vld [vmem:[#allocation10 + $0x10] sm:$0xff]
    %v787 = vld [vmem:[#allocation10 + $0x18] sm:$0xff]
    %v788 = vld [vmem:[%s10] sm:$0x1]
    %v790 = vperm.slane %v788, 0
    %791 = vmatpush.msra.mxu0 0.0
    %792 = vmatpush.msra.mxu0 0.0
    %793 = vmatpush.msra.mxu0 0.0
    %794 = vmatpush.msra.mxu0 0.0
    %795 = vmatpush.msra.mxu0 0.0
    %796 = vmatpush.msra.mxu0 0.0
    %797 = vmatpush.msra.mxu0 0.0
    %798 = vmatpush.msra.mxu0 0.0
    %799 = vmatpush.msra.mxu0 0.0
    %800 = vmatpush.msra.mxu0 0.0
    %801 = vmatpush.msra.mxu0 0.0
    %802 = vmatpush.msra.mxu0 0.0
    %803 = vmatpush.msra.mxu0 %v787
    %804 = vmatpush.msra.mxu0 %v786
    %805 = vmatpush.msra.mxu0 %v785
    %806 = vmatpush.msra.mxu0 %v784
    %807 = vmatmul.f32.gmra.mxu0 %v150
    %v808 = vpop.f32.mrf.mxu0
    %v809 = vadd.f32 0.0, %v808
    %810 = vdwg.mxu0
    %v811 = vadd.f32 %v779, %v809
    %v812 = vxor.u32 %v811, 2147483648
    %v813 = vmul.f32 %v812, 1.442695
    %v814 = vpow.pop %v813
    %v815 = vadd.f32 %v814, 1.0
    %v816 = vrcp.pop %v815
    %v817 = vmul.f32 %v815, %v816
    %v818 = vsub.f32 1.0, %v817
    %v819 = vmul.f32 %v816, %v818
    %v820 = vadd.f32 %v816, %v819
    %vm821 = vweird.f32 %v815
    %vm822 = vweird.f32 %v816
    %vm823 = vmor %vm821, %vm822
    %v824 = vsel %vm823, %v816, %v820
    %v825 = vand.u32 2147483647, %v815
    %vm826 = vcmp.eq.f32.partialorder %v825, 8.507059e+37
    %v827 = vand.u32 %v815, 2147483648
    %v828 = vor.u32 1.1754944e-38, %v827
    %v829 = vsel %vm826, %v828, %v824
    %v830 = vmul.f32 1.0, %v829
    %831 = vrot.lane.b32.xlu0 %v790, 64
    %v832 = vpop.permute.xlu0 %831
    %v834 = vadd.f32 %v809, %v832
    %836 = vrot.lane.b32.xlu0 %v834, 64
    %v837 = vpop.permute.xlu0 %836
    %v839 = vmul.f32 %v830, %v837
    %841 = vrot.lane.b32.xlu0 %v839, 64
    %v842 = vpop.permute.xlu0 %841
    %v844 = vadd.f32 %v779, %v842
    %v845 = vtanh.pop %v844
    %v846 = vsub.f32 1.0, %v830
    %848 = vrot.lane.b32.xlu0 %v845, 96
    %v849 = vpop.permute.xlu0 %848
    %v851 = vmul.f32 %v846, %v849
    %v852 = vmul.f32 %v830, 0.0
    %v853 = vadd.f32 %v851, %v852
    %p854 = scmp.eq.s32.totalorder %s101, 1
    %s855 = scalar_select %p854, 1, 0
    %s856 = scvt.s32.f32 %s855
    %v857 = vstv %s856
    %v858 = vmul.f32 %v857, %v853
    %s859 = ssub.f32 1.0, %s856
    %v860 = vstv %s859
    %v861 = vmul.f32 %v860, 0.0
    %v862 = vadd.f32 %v858, %v861
    %864 = vrot.lane.b32.xlu0 %v853, 96
    %v865 = vpop.permute.xlu0 %864
    %v866 = vsel %vm112, %v865, 0
    %868 = vmatpush.msra.mxu0 0.0
    %869 = vmatpush.msra.mxu0 0.0
    %870 = vmatpush.msra.mxu0 0.0
    %871 = vmatpush.msra.mxu0 0.0
    %872 = vmatpush.msra.mxu0 0.0
    %873 = vmatpush.msra.mxu0 0.0
    %874 = vmatpush.msra.mxu0 0.0
    %875 = vmatpush.msra.mxu0 0.0
    %876 = vmatpush.msra.mxu0 0.0
    %877 = vmatpush.msra.mxu0 0.0
    %878 = vmatpush.msra.mxu0 0.0
    %879 = vmatpush.msra.mxu0 0.0
    %880 = vmatpush.msra.mxu0 %v787
    %881 = vmatpush.msra.mxu0 %v786
    %882 = vmatpush.msra.mxu0 %v785
    %883 = vmatpush.msra.mxu0 %v784
    %884 = vmatmul.f32.gmra.mxu0 %v866
    %v885 = vpop.f32.mrf.mxu0
    %v886 = vadd.f32 0.0, %v885
    %887 = vdwg.mxu0
    %v889 = vrot.slane %v886, 6
    %v891 = vadd.f32 %v779, %v889
    %v892 = vxor.u32 %v891, 2147483648
    %v893 = vmul.f32 %v892, 1.442695
    %v894 = vpow.pop %v893
    %v895 = vadd.f32 %v894, 1.0
    %v896 = vrcp.pop %v895
    %v897 = vmul.f32 %v895, %v896
    %v898 = vsub.f32 1.0, %v897
    %v899 = vmul.f32 %v896, %v898
    %v900 = vadd.f32 %v896, %v899
    %vm901 = vweird.f32 %v895
    %vm902 = vweird.f32 %v896
    %vm903 = vmor %vm901, %vm902
    %v904 = vsel %vm903, %v896, %v900
    %v905 = vand.u32 2147483647, %v895
    %vm906 = vcmp.eq.f32.partialorder %v905, 8.507059e+37
    %v907 = vand.u32 %v895, 2147483648
    %v908 = vor.u32 1.1754944e-38, %v907
    %v909 = vsel %vm906, %v908, %v904
    %v910 = vmul.f32 1.0, %v909
    %v911 = vadd.f32 %v886, %v832
    %v913 = vrot.slane %v911, 6
    %914 = vrot.lane.b32.xlu0 %v913, 64
    %v915 = vpop.permute.xlu0 %914
    %v917 = vmul.f32 %v910, %v915
    %919 = vrot.lane.b32.xlu0 %v917, 64
    %v920 = vpop.permute.xlu0 %919
    %v922 = vadd.f32 %v779, %v920
    %v923 = vtanh.pop %v922
    %v924 = vsub.f32 1.0, %v910
    %926 = vrot.lane.b32.xlu0 %v923, 96
    %v927 = vpop.permute.xlu0 %926
    %v929 = vmul.f32 %v924, %v927
    %v930 = vrot.slane %v853, 6
    %v932 = vmul.f32 %v910, %v930
    %v933 = vadd.f32 %v929, %v932
    %p934 = scmp.eq.s32.totalorder %s101, 2
    %s935 = scalar_select %p934, 1, 0
    %s936 = scvt.s32.f32 %s935
    %v937 = vstv %s936
    %v938 = vmul.f32 %v937, %v933
    %s939 = ssub.f32 1.0, %s936
    %v940 = vstv %s939
    %v941 = vmul.f32 %v940, %v862
    %v943 = vrot.slane %v941, 6
    %v945 = vadd.f32 %v938, %v943
    %v947 = vrot.slane %v933, 2
    %948 = vrot.lane.b32.xlu0 %v947, 96
    %v949 = vpop.permute.xlu0 %948
    %v950 = vsel %vm112, %v949, 0
    %952 = vmatpush.msra.mxu0 0.0
    %953 = vmatpush.msra.mxu0 0.0
    %954 = vmatpush.msra.mxu0 0.0
    %955 = vmatpush.msra.mxu0 0.0
    %956 = vmatpush.msra.mxu0 0.0
    %957 = vmatpush.msra.mxu0 0.0
    %958 = vmatpush.msra.mxu0 0.0
    %959 = vmatpush.msra.mxu0 0.0
    %960 = vmatpush.msra.mxu0 0.0
    %961 = vmatpush.msra.mxu0 0.0
    %962 = vmatpush.msra.mxu0 0.0
    %963 = vmatpush.msra.mxu0 0.0
    %964 = vmatpush.msra.mxu0 %v787
    %965 = vmatpush.msra.mxu0 %v786
    %966 = vmatpush.msra.mxu0 %v785
    %967 = vmatpush.msra.mxu0 %v784
    %968 = vmatmul.f32.gmra.mxu0 %v950
    %v969 = vpop.f32.mrf.mxu0
    %v970 = vadd.f32 0.0, %v969
    %971 = vdwg.mxu0
    %v973 = vrot.slane %v970, 4
    %v975 = vadd.f32 %v779, %v973
    %v976 = vxor.u32 %v975, 2147483648
    %v977 = vmul.f32 %v976, 1.442695
    %v978 = vpow.pop %v977
    %v979 = vadd.f32 %v978, 1.0
    %v980 = vrcp.pop %v979
    %v981 = vmul.f32 %v979, %v980
    %v982 = vsub.f32 1.0, %v981
    %v983 = vmul.f32 %v980, %v982
    %v984 = vadd.f32 %v980, %v983
    %vm985 = vweird.f32 %v979
    %vm986 = vweird.f32 %v980
    %vm987 = vmor %vm985, %vm986
    %v988 = vsel %vm987, %v980, %v984
    %v989 = vand.u32 2147483647, %v979
    %vm990 = vcmp.eq.f32.partialorder %v989, 8.507059e+37
    %v991 = vand.u32 %v979, 2147483648
    %v992 = vor.u32 1.1754944e-38, %v991
    %v993 = vsel %vm990, %v992, %v988
    %v994 = vmul.f32 1.0, %v993
    %v995 = vadd.f32 %v970, %v832
    %v997 = vrot.slane %v995, 4
    %998 = vrot.lane.b32.xlu0 %v997, 64
    %v999 = vpop.permute.xlu0 %998
    %v1001 = vmul.f32 %v994, %v999
    %1003 = vrot.lane.b32.xlu0 %v1001, 64
    %v1004 = vpop.permute.xlu0 %1003
    %v1006 = vadd.f32 %v779, %v1004
    %v1007 = vtanh.pop %v1006
    %v1008 = vsub.f32 1.0, %v994
    %1010 = vrot.lane.b32.xlu0 %v1007, 96
    %v1011 = vpop.permute.xlu0 %1010
    %v1013 = vmul.f32 %v1008, %v1011
    %v1014 = vrot.slane %v933, 6
    %v1016 = vmul.f32 %v994, %v1014
    %v1017 = vadd.f32 %v1013, %v1016
    %p1018 = scmp.eq.s32.totalorder %s101, 3
    %s1019 = scalar_select %p1018, 1, 0
    %s1020 = scvt.s32.f32 %s1019
    %v1021 = vstv %s1020
    %v1022 = vmul.f32 %v1021, %v1017
    %s1023 = ssub.f32 1.0, %s1020
    %v1024 = vstv %s1023
    %v1025 = vmul.f32 %v1024, %v945
    %v1027 = vrot.slane %v1025, 6
    %v1029 = vadd.f32 %v1022, %v1027
    %v1031 = vrot.slane %v1017, 4
    %1032 = vrot.lane.b32.xlu0 %v1031, 96
    %v1033 = vpop.permute.xlu0 %1032
    %v1034 = vsel %vm112, %v1033, 0
    %1036 = vmatpush.msra.mxu0 0.0
    %1037 = vmatpush.msra.mxu0 0.0
    %1038 = vmatpush.msra.mxu0 0.0
    %1039 = vmatpush.msra.mxu0 0.0
    %1040 = vmatpush.msra.mxu0 0.0
    %1041 = vmatpush.msra.mxu0 0.0
    %1042 = vmatpush.msra.mxu0 0.0
    %1043 = vmatpush.msra.mxu0 0.0
    %1044 = vmatpush.msra.mxu0 0.0
    %1045 = vmatpush.msra.mxu0 0.0
    %1046 = vmatpush.msra.mxu0 0.0
    %1047 = vmatpush.msra.mxu0 0.0
    %1048 = vmatpush.msra.mxu0 %v787
    %1049 = vmatpush.msra.mxu0 %v786
    %1050 = vmatpush.msra.mxu0 %v785
    %1051 = vmatpush.msra.mxu0 %v784
    %1052 = vmatmul.f32.gmra.mxu0 %v1034
    %v1053 = vpop.f32.mrf.mxu0
    %v1054 = vadd.f32 0.0, %v1053
    %1055 = vdwg.mxu0
    %v1057 = vrot.slane %v1054, 2
    %v1059 = vadd.f32 %v779, %v1057
    %v1060 = vxor.u32 %v1059, 2147483648
    %v1061 = vmul.f32 %v1060, 1.442695
    %v1062 = vpow.pop %v1061
    %v1063 = vadd.f32 %v1062, 1.0
    %v1064 = vrcp.pop %v1063
    %v1065 = vmul.f32 %v1063, %v1064
    %v1066 = vsub.f32 1.0, %v1065
    %v1067 = vmul.f32 %v1064, %v1066
    %v1068 = vadd.f32 %v1064, %v1067
    %vm1069 = vweird.f32 %v1063
    %vm1070 = vweird.f32 %v1064
    %vm1071 = vmor %vm1069, %vm1070
    %v1072 = vsel %vm1071, %v1064, %v1068
    %v1073 = vand.u32 2147483647, %v1063
    %vm1074 = vcmp.eq.f32.partialorder %v1073, 8.507059e+37
    %v1075 = vand.u32 %v1063, 2147483648
    %v1076 = vor.u32 1.1754944e-38, %v1075
    %v1077 = vsel %vm1074, %v1076, %v1072
    %v1078 = vmul.f32 1.0, %v1077
    %v1079 = vadd.f32 %v1054, %v832
    %v1081 = vrot.slane %v1079, 2
    %1082 = vrot.lane.b32.xlu0 %v1081, 64
    %v1083 = vpop.permute.xlu0 %1082
    %v1085 = vmul.f32 %v1078, %v1083
    %1087 = vrot.lane.b32.xlu0 %v1085, 64
    %v1088 = vpop.permute.xlu0 %1087
    %v1090 = vadd.f32 %v779, %v1088
    %v1091 = vtanh.pop %v1090
    %v1092 = vsub.f32 1.0, %v1078
    %1094 = vrot.lane.b32.xlu0 %v1091, 96
    %v1095 = vpop.permute.xlu0 %1094
    %v1097 = vmul.f32 %v1092, %v1095
    %v1098 = vrot.slane %v1017, 6
    %v1100 = vmul.f32 %v1078, %v1098
    %v1101 = vadd.f32 %v1097, %v1100
    %p1102 = scmp.eq.s32.totalorder %s101, 4
    %s1103 = scalar_select %p1102, 1, 0
    %s1104 = scvt.s32.f32 %s1103
    %v1105 = vstv %s1104
    %v1106 = vmul.f32 %v1105, %v1101
    %s1107 = ssub.f32 1.0, %s1104
    %v1108 = vstv %s1107
    %v1109 = vmul.f32 %v1108, %v1029
    %v1111 = vrot.slane %v1109, 6
    %v1113 = vadd.f32 %v1106, %v1111
    %v1115 = vrot.slane %v1101, 6
    %1116 = vrot.lane.b32.xlu0 %v1115, 96
    %v1117 = vpop.permute.xlu0 %1116
    %v1118 = vsel %vm112, %v1117, 0
    %1120 = vmatpush.msra.mxu0 0.0
    %1121 = vmatpush.msra.mxu0 0.0
    %1122 = vmatpush.msra.mxu0 0.0
    %1123 = vmatpush.msra.mxu0 0.0
    %1124 = vmatpush.msra.mxu0 0.0
    %1125 = vmatpush.msra.mxu0 0.0
    %1126 = vmatpush.msra.mxu0 0.0
    %1127 = vmatpush.msra.mxu0 0.0
    %1128 = vmatpush.msra.mxu0 0.0
    %1129 = vmatpush.msra.mxu0 0.0
    %1130 = vmatpush.msra.mxu0 0.0
    %1131 = vmatpush.msra.mxu0 0.0
    %1132 = vmatpush.msra.mxu0 %v787
    %1133 = vmatpush.msra.mxu0 %v786
    %1134 = vmatpush.msra.mxu0 %v785
    %1135 = vmatpush.msra.mxu0 %v784
    %1136 = vmatmul.f32.gmra.mxu0 %v1118
    %v1137 = vpop.f32.mrf.mxu0
    %v1138 = vadd.f32 0.0, %v1137
    %1139 = vdwg.mxu0
    %v1140 = vadd.f32 %v782, %v1138
    %v1141 = vxor.u32 %v1140, 2147483648
    %v1142 = vmul.f32 %v1141, 1.442695
    %v1143 = vpow.pop %v1142
    %v1144 = vadd.f32 %v1143, 1.0
    %v1145 = vrcp.pop %v1144
    %v1146 = vmul.f32 %v1144, %v1145
    %v1147 = vsub.f32 1.0, %v1146
    %v1148 = vmul.f32 %v1145, %v1147
    %v1149 = vadd.f32 %v1145, %v1148
    %vm1150 = vweird.f32 %v1144
    %vm1151 = vweird.f32 %v1145
    %vm1152 = vmor %vm1150, %vm1151
    %v1153 = vsel %vm1152, %v1145, %v1149
    %v1154 = vand.u32 2147483647, %v1144
    %vm1155 = vcmp.eq.f32.partialorder %v1154, 8.507059e+37
    %v1156 = vand.u32 %v1144, 2147483648
    %v1157 = vor.u32 1.1754944e-38, %v1156
    %v1158 = vsel %vm1155, %v1157, %v1153
    %v1159 = vmul.f32 1.0, %v1158
    %v1160 = vadd.f32 %v1138, %v832
    %1162 = vrot.lane.b32.xlu0 %v1160, 64
    %v1163 = vpop.permute.xlu0 %1162
    %v1165 = vmul.f32 %v1159, %v1163
    %1167 = vrot.lane.b32.xlu0 %v1165, 64
    %v1168 = vpop.permute.xlu0 %1167
    %v1170 = vadd.f32 %v782, %v1168
    %v1171 = vtanh.pop %v1170
    %v1172 = vsub.f32 1.0, %v1159
    %1174 = vrot.lane.b32.xlu0 %v1171, 96
    %v1175 = vpop.permute.xlu0 %1174
    %v1177 = vmul.f32 %v1172, %v1175
    %v1179 = vmul.f32 %v1159, %v1115
    %v1180 = vadd.f32 %v1177, %v1179
    %p1181 = scmp.eq.s32.totalorder %s101, 5
    %s1182 = scalar_select %p1181, 1, 0
    %s1183 = scvt.s32.f32 %s1182
    %v1184 = vstv %s1183
    %v1185 = vmul.f32 %v1184, %v1180
    %s1186 = ssub.f32 1.0, %s1183
    %v1187 = vstv %s1186
    %v1188 = vmul.f32 %v1187, %v1113
    %v1190 = vrot.slane %v1188, 6
    %v1192 = vadd.f32 %v1185, %v1190
    %1194 = vrot.lane.b32.xlu0 %v1180, 96
    %v1195 = vpop.permute.xlu0 %1194
    %v1196 = vsel %vm112, %v1195, 0
    %1198 = vmatpush.msra.mxu0 0.0
    %1199 = vmatpush.msra.mxu0 0.0
    %1200 = vmatpush.msra.mxu0 0.0
    %1201 = vmatpush.msra.mxu0 0.0
    %1202 = vmatpush.msra.mxu0 0.0
    %1203 = vmatpush.msra.mxu0 0.0
    %1204 = vmatpush.msra.mxu0 0.0
    %1205 = vmatpush.msra.mxu0 0.0
    %1206 = vmatpush.msra.mxu0 0.0
    %1207 = vmatpush.msra.mxu0 0.0
    %1208 = vmatpush.msra.mxu0 0.0
    %1209 = vmatpush.msra.mxu0 0.0
    %1210 = vmatpush.msra.mxu0 %v787
    %1211 = vmatpush.msra.mxu0 %v786
    %1212 = vmatpush.msra.mxu0 %v785
    %1213 = vmatpush.msra.mxu0 %v784
    %1214 = vmatmul.f32.gmra.mxu0 %v1196
    %v1215 = vpop.f32.mrf.mxu0
    %v1216 = vadd.f32 0.0, %v1215
    %1217 = vdwg.mxu0
    %v1219 = vrot.slane %v1216, 6
    %v1221 = vadd.f32 %v782, %v1219
    %v1222 = vxor.u32 %v1221, 2147483648
    %v1223 = vmul.f32 %v1222, 1.442695
    %v1224 = vpow.pop %v1223
    %v1225 = vadd.f32 %v1224, 1.0
    %v1226 = vrcp.pop %v1225
    %v1227 = vmul.f32 %v1225, %v1226
    %v1228 = vsub.f32 1.0, %v1227
    %v1229 = vmul.f32 %v1226, %v1228
    %v1230 = vadd.f32 %v1226, %v1229
    %vm1231 = vweird.f32 %v1225
    %vm1232 = vweird.f32 %v1226
    %vm1233 = vmor %vm1231, %vm1232
    %v1234 = vsel %vm1233, %v1226, %v1230
    %v1235 = vand.u32 2147483647, %v1225
    %vm1236 = vcmp.eq.f32.partialorder %v1235, 8.507059e+37
    %v1237 = vand.u32 %v1225, 2147483648
    %v1238 = vor.u32 1.1754944e-38, %v1237
    %v1239 = vsel %vm1236, %v1238, %v1234
    %v1240 = vmul.f32 1.0, %v1239
    %v1241 = vadd.f32 %v1216, %v832
    %v1243 = vrot.slane %v1241, 6
    %1244 = vrot.lane.b32.xlu0 %v1243, 64
    %v1245 = vpop.permute.xlu0 %1244
    %v1247 = vmul.f32 %v1240, %v1245
    %1249 = vrot.lane.b32.xlu0 %v1247, 64
    %v1250 = vpop.permute.xlu0 %1249
    %v1252 = vadd.f32 %v782, %v1250
    %v1253 = vtanh.pop %v1252
    %v1254 = vsub.f32 1.0, %v1240
    %1256 = vrot.lane.b32.xlu0 %v1253, 96
    %v1257 = vpop.permute.xlu0 %1256
    %v1259 = vmul.f32 %v1254, %v1257
    %v1260 = vrot.slane %v1180, 6
    %v1262 = vmul.f32 %v1240, %v1260
    %v1263 = vadd.f32 %v1259, %v1262
    %p1264 = scmp.eq.s32.totalorder %s101, 6
    %s1265 = scalar_select %p1264, 1, 0
    %s1266 = scvt.s32.f32 %s1265
    %v1267 = vstv %s1266
    %v1268 = vmul.f32 %v1267, %v1263
    %s1269 = ssub.f32 1.0, %s1266
    %v1270 = vstv %s1269
    %v1271 = vmul.f32 %v1270, %v1192
    %v1273 = vrot.slane %v1271, 6
    %v1275 = vadd.f32 %v1268, %v1273
    %v1277 = vrot.slane %v1263, 2
    %1278 = vrot.lane.b32.xlu0 %v1277, 96
    %v1279 = vpop.permute.xlu0 %1278
    %v1280 = vsel %vm112, %v1279, 0
    %1282 = vmatpush.msra.mxu0 0.0
    %1283 = vmatpush.msra.mxu0 0.0
    %1284 = vmatpush.msra.mxu0 0.0
    %1285 = vmatpush.msra.mxu0 0.0
    %1286 = vmatpush.msra.mxu0 0.0
    %1287 = vmatpush.msra.mxu0 0.0
    %1288 = vmatpush.msra.mxu0 0.0
    %1289 = vmatpush.msra.mxu0 0.0
    %1290 = vmatpush.msra.mxu0 0.0
    %1291 = vmatpush.msra.mxu0 0.0
    %1292 = vmatpush.msra.mxu0 0.0
    %1293 = vmatpush.msra.mxu0 0.0
    %1294 = vmatpush.msra.mxu0 %v787
    %1295 = vmatpush.msra.mxu0 %v786
    %1296 = vmatpush.msra.mxu0 %v785
    %1297 = vmatpush.msra.mxu0 %v784
    %1298 = vmatmul.f32.gmra.mxu0 %v1280
    %v1299 = vpop.f32.mrf.mxu0
    %v1300 = vadd.f32 0.0, %v1299
    %1301 = vdwg.mxu0
    %v1303 = vrot.slane %v1300, 4
    %v1305 = vadd.f32 %v782, %v1303
    %v1306 = vxor.u32 %v1305, 2147483648
    %v1307 = vmul.f32 %v1306, 1.442695
    %v1308 = vpow.pop %v1307
    %v1309 = vadd.f32 %v1308, 1.0
    %v1310 = vrcp.pop %v1309
    %v1311 = vmul.f32 %v1309, %v1310
    %v1312 = vsub.f32 1.0, %v1311
    %v1313 = vmul.f32 %v1310, %v1312
    %v1314 = vadd.f32 %v1310, %v1313
    %vm1315 = vweird.f32 %v1309
    %vm1316 = vweird.f32 %v1310
    %vm1317 = vmor %vm1315, %vm1316
    %v1318 = vsel %vm1317, %v1310, %v1314
    %v1319 = vand.u32 2147483647, %v1309
    %vm1320 = vcmp.eq.f32.partialorder %v1319, 8.507059e+37
    %v1321 = vand.u32 %v1309, 2147483648
    %v1322 = vor.u32 1.1754944e-38, %v1321
    %v1323 = vsel %vm1320, %v1322, %v1318
    %v1324 = vmul.f32 1.0, %v1323
    %v1325 = vadd.f32 %v1300, %v832
    %v1327 = vrot.slane %v1325, 4
    %1328 = vrot.lane.b32.xlu0 %v1327, 64
    %v1329 = vpop.permute.xlu0 %1328
    %v1331 = vmul.f32 %v1324, %v1329
    %1333 = vrot.lane.b32.xlu0 %v1331, 64
    %v1334 = vpop.permute.xlu0 %1333
    %v1336 = vadd.f32 %v782, %v1334
    %v1337 = vtanh.pop %v1336
    %v1338 = vsub.f32 1.0, %v1324
    %1340 = vrot.lane.b32.xlu0 %v1337, 96
    %v1341 = vpop.permute.xlu0 %1340
    %v1343 = vmul.f32 %v1338, %v1341
    %v1344 = vrot.slane %v1263, 6
    %v1346 = vmul.f32 %v1324, %v1344
    %v1347 = vadd.f32 %v1343, %v1346
    %p1348 = scmp.eq.s32.totalorder %s101, 7
    %s1349 = scalar_select %p1348, 1, 0
    %s1350 = scvt.s32.f32 %s1349
    %v1351 = vstv %s1350
    %v1352 = vmul.f32 %v1351, %v1347
    %s1353 = ssub.f32 1.0, %s1350
    %v1354 = vstv %s1353
    %v1355 = vmul.f32 %v1354, %v1275
    %v1357 = vrot.slane %v1355, 6
    %v1359 = vadd.f32 %v1352, %v1357
    %v1361 = vrot.slane %v1347, 4
    %1362 = vrot.lane.b32.xlu0 %v1361, 96
    %v1363 = vpop.permute.xlu0 %1362
    %v1364 = vsel %vm112, %v1363, 0
    %1366 = vmatpush.msra.mxu0 0.0
    %1367 = vmatpush.msra.mxu0 0.0
    %1368 = vmatpush.msra.mxu0 0.0
    %1369 = vmatpush.msra.mxu0 0.0
    %1370 = vmatpush.msra.mxu0 0.0
    %1371 = vmatpush.msra.mxu0 0.0
    %1372 = vmatpush.msra.mxu0 0.0
    %1373 = vmatpush.msra.mxu0 0.0
    %1374 = vmatpush.msra.mxu0 0.0
    %1375 = vmatpush.msra.mxu0 0.0
    %1376 = vmatpush.msra.mxu0 0.0
    %1377 = vmatpush.msra.mxu0 0.0
    %1378 = vmatpush.msra.mxu0 %v787
    %1379 = vmatpush.msra.mxu0 %v786
    %1380 = vmatpush.msra.mxu0 %v785
    %1381 = vmatpush.msra.mxu0 %v784
    %1382 = vmatmul.f32.gmra.mxu0 %v1364
    %v1383 = vpop.f32.mrf.mxu0
    %v1384 = vadd.f32 0.0, %v1383
    %1385 = vdwg.mxu0
    %v1387 = vrot.slane %v1384, 2
    %v1389 = vadd.f32 %v782, %v1387
    %v1390 = vxor.u32 %v1389, 2147483648
    %v1391 = vmul.f32 %v1390, 1.442695
    %v1392 = vpow.pop %v1391
    %v1393 = vadd.f32 %v1392, 1.0
    %v1394 = vrcp.pop %v1393
    %v1395 = vmul.f32 %v1393, %v1394
    %v1396 = vsub.f32 1.0, %v1395
    %v1397 = vmul.f32 %v1394, %v1396
    %v1398 = vadd.f32 %v1394, %v1397
    %vm1399 = vweird.f32 %v1393
    %vm1400 = vweird.f32 %v1394
    %vm1401 = vmor %vm1399, %vm1400
    %v1402 = vsel %vm1401, %v1394, %v1398
    %v1403 = vand.u32 2147483647, %v1393
    %vm1404 = vcmp.eq.f32.partialorder %v1403, 8.507059e+37
    %v1405 = vand.u32 %v1393, 2147483648
    %v1406 = vor.u32 1.1754944e-38, %v1405
    %v1407 = vsel %vm1404, %v1406, %v1402
    %v1408 = vmul.f32 1.0, %v1407
    %v1409 = vadd.f32 %v1384, %v832
    %v1411 = vrot.slane %v1409, 2
    %1412 = vrot.lane.b32.xlu0 %v1411, 64
    %v1413 = vpop.permute.xlu0 %1412
    %v1415 = vmul.f32 %v1408, %v1413
    %1417 = vrot.lane.b32.xlu0 %v1415, 64
    %v1418 = vpop.permute.xlu0 %1417
    %v1420 = vadd.f32 %v782, %v1418
    %v1421 = vtanh.pop %v1420
    %v1422 = vsub.f32 1.0, %v1408
    %1424 = vrot.lane.b32.xlu0 %v1421, 96
    %v1425 = vpop.permute.xlu0 %1424
    %v1427 = vmul.f32 %v1422, %v1425
    %v1428 = vrot.slane %v1347, 6
    %v1430 = vmul.f32 %v1408, %v1428
    %v1431 = vadd.f32 %v1427, %v1430
    %p1432 = scmp.eq.s32.totalorder %s101, 8
    %s1433 = scalar_select %p1432, 1, 0
    %s1434 = scvt.s32.f32 %s1433
    %v1435 = vstv %s1434
    %v1436 = vmul.f32 %v1435, %v1431
    %s1437 = ssub.f32 1.0, %s1434
    %v1438 = vstv %s1437
    %v1439 = vmul.f32 %v1438, %v1359
    %v1441 = vrot.slane %v1439, 6
    %v1443 = vadd.f32 %v1436, %v1441
    %v1444 = vld [vmem:[%s2] sm:$0x3]
    %v1445 = vstv %s101
    %vm1446 = vcmp.eq.s32.totalorder %v1444, %v1445
    %v1447 = vsel %vm1446, 1, 0
    %v1448 = vcvt.s32.f32 %v1447
    %1450 = vset.pattern.permute.xlu0 0
    %1451 = vperm.xlu0 %1450, %v1448
    %v1452 = vpop.permute.xlu0 %1451
    %v1453 = vrot.slane %v1452, 2
    %v1455 = vmul.f32 %v1443, %v1453
    %v1456 = vld [vmem:[%s11] sm:$0xff]
    %v1457 = vld [vmem:[%s11 + $0x8] sm:$0xff]
    %v1458 = vld [vmem:[%s11 + $0x10] sm:$0xff]
    %v1459 = vld [vmem:[%s11 + $0x18] sm:$0xff]
    %v1460 = vld [vmem:[%s12] sm:$0x1]
    %v1462 = vperm.slane %v1460, 0
    %v1465 = vrot.slane %v1455, 6
    %1466 = vrot.lane.b32.xlu0 %v1465, 96
    %v1467 = vpop.permute.xlu0 %1466
    %v1468 = vsel %vm112, %v1467, 0
    %1470 = vmatpush.msra.mxu0 0.0
    %1471 = vmatpush.msra.mxu0 0.0
    %1472 = vmatpush.msra.mxu0 0.0
    %1473 = vmatpush.msra.mxu0 0.0
    %1474 = vmatpush.msra.mxu0 0.0
    %1475 = vmatpush.msra.mxu0 0.0
    %1476 = vmatpush.msra.mxu0 0.0
    %1477 = vmatpush.msra.mxu0 0.0
    %1478 = vmatpush.msra.mxu0 0.0
    %1479 = vmatpush.msra.mxu0 0.0
    %1480 = vmatpush.msra.mxu0 0.0
    %1481 = vmatpush.msra.mxu0 0.0
    %1482 = vmatpush.msra.mxu0 %v1459
    %1483 = vmatpush.msra.mxu0 %v1458
    %1484 = vmatpush.msra.mxu0 %v1457
    %1485 = vmatpush.msra.mxu0 %v1456
    %1486 = vmatmul.f32.gmra.mxu0 %v1468
    %v1487 = vpop.f32.mrf.mxu0
    %v1488 = vadd.f32 %v1462, %v1487
    %1489 = vdwg.mxu0
    %vm1490 = vcmask 140288
    %1491 = vst.msk [vmem:[#allocation11] sm:$0x3] %vm1490, %v1488
    // Predicated region
    $region62: #{tpu_custom_call.1} parent=1 // pred_check
      _
    $region63: #{tpu_custom_call.1} parent=1 // pred_check_branch
      %1493 = sbr.rel (0) target = $region65
    $region64: #{tpu_custom_call.1} parent=1 // pred_region
      %1495 = vsyncadd [#allocation7], 0
      %s1497 = sshll.u32 [#allocation11], 4
      %s1498 = int_to_ptr.vmem [resolvable:$true] %s1497
      %s1499 = sshll.u32 %s13, 4
      %s1500 = int_to_ptr.hbm [resolvable:$true] %s1499
      %1502 = dma.vmem_to_hbm [thread:$0]  %s1498, 32, %s1500, [#allocation7]
    $region65: #{tpu_custom_call.1} parent=1 // pred_fallthru
      _
    // Predicated region
    $region66: #{tpu_custom_call.1} parent=1 // pred_check
      _
    $region67: #{tpu_custom_call.1} parent=1 // pred_check_branch
      %1504 = sbr.rel (0) target = $region69
    $region68: #{tpu_custom_call.1} parent=1 // pred_region
      %1506 = dma.done [#allocation7], 32
    $region69: #{tpu_custom_call.1} parent=1 // pred_fallthru
      _
    %1507 = vsyncpa [#allocation6], 1
    %1508 = vsyncpa [#allocation9], 1
    %1509 = vsyncpa [#allocation7], 1

</llo_original>
